<compile_context>
chip_gen: v7x
topology: tpu7x:2x2x1
jax: 0.10.0
libtpu: 0.0.40
codegen_flags: <defaults>
</compile_context>

<pallas_src>
import functools

import numpy as np
import jax
import jax.numpy as jnp
from jax.experimental import pallas as pl
from jax.experimental.pallas import tpu as pltpu


# ----------------------------------------------------------------------------
# Glue: bilinear interpolation with align_corners=True (matches F.interpolate)
# ----------------------------------------------------------------------------
def bilinear_align_corners(x, out_h, out_w):
    """x: (B, C, H, W) -> (B, C, out_h, out_w), bilinear, align_corners=True."""
    B, C, H, W = x.shape
    if (H, W) == (out_h, out_w):
        return x

    def coords(out_size, in_size):
        if out_size == 1:
            return jnp.zeros((1,), jnp.float32)
        return jnp.arange(out_size, dtype=jnp.float32) * (in_size - 1) / (out_size - 1)

    ys = coords(out_h, H)
    xs = coords(out_w, W)
    y0 = jnp.floor(ys).astype(jnp.int32)
    x0 = jnp.floor(xs).astype(jnp.int32)
    y1 = jnp.minimum(y0 + 1, H - 1)
    x1 = jnp.minimum(x0 + 1, W - 1)
    wy = (ys - y0.astype(jnp.float32))[None, None, :, None]
    wx = (xs - x0.astype(jnp.float32))[None, None, None, :]

    a = x[:, :, y0][:, :, :, x0]
    b = x[:, :, y0][:, :, :, x1]
    c = x[:, :, y1][:, :, :, x0]
    d = x[:, :, y1][:, :, :, x1]
    top = a * (1.0 - wx) + b * wx
    bot = c * (1.0 - wx) + d * wx
    return top * (1.0 - wy) + bot * wy


# ----------------------------------------------------------------------------
# Pallas kernel: channel softmax + mean pairwise Euclidean distance over S
#   dist[i, j] = mean_s || softmax_c(z[i, :, s]) - softmax_c(z[j, :, s]) ||_2
# Layout: block (rows, C, ts) with S on the 128-lane axis, C on sublanes.
# ----------------------------------------------------------------------------
def _pair_dist_kernel(z_ref, out_ref, acc_ref, *, s_total, tiles_per_split):
    n_rows, _, ts = z_ref.shape
    split = pl.program_id(0)
    t = pl.program_id(1)

    @pl.when(t == 0)
    def _():
        acc_ref[...] = jnp.zeros_like(acc_ref)

    # Softmax over channels (tiny sublane reduce); everything stays lane-dense over S.
    x = z_ref[...].astype(jnp.float32)                       # (rows, C, ts)
    x = x - jnp.max(x, axis=1, keepdims=True)
    ex = jnp.exp(x)
    p = ex * pl.reciprocal(jnp.sum(ex, axis=1, keepdims=True), approx=True)

    # Lane-validity mask for the ragged tail (uses the *logical*, unclamped offset).
    start = (split * tiles_per_split + t) * ts
    lane = jax.lax.broadcasted_iota(jnp.int32, (1, ts), 1)
    valid = (start + lane) < s_total                         # (1, ts)

    # Upper triangle only, grouped by diagonal offset o: pairs (i, i+o), i < n_rows - o.
    # Direct VPU diff-square (no MXU, no cancellation), EUP sqrt, lane-wise accumulate.
    for o in range(1, n_rows):
        diff = p[: n_rows - o] - p[o:]                       # (n_rows - o, C, ts)
        d2 = jnp.sum(diff * diff, axis=1)                    # (n_rows - o, ts)
        d = jnp.where(valid, jnp.sqrt(d2), 0.0)
        acc_ref[o - 1, 0:n_rows - o, :] += d

    @pl.when(t == pl.num_programs(1) - 1)
    def _():
        # One lane reduce per (offset, i) pair; (rows-1, rows) scalars written once.
        out_ref[...] = jnp.sum(acc_ref[...], axis=-1)[None]


def _pick_s_tile(S, n_rows, C):
    """Largest lane-axis tile that keeps the working set comfortably inside the
    default scoped-VMEM budget on every TPU generation (incl. v7x's 64 MiB VMEM)."""
    c_pad = ((C + 7) // 8) * 8                               # sublane padding of C
    per_lane_bytes = 4 * (
        2 * n_rows * c_pad                                   # double-buffered input block
        + 5 * n_rows * c_pad                                 # softmax / diff temporaries
        + (n_rows - 1) * n_rows                              # lane-wise pair accumulator
        + 2 * n_rows)
    budget = 8 * 1024 * 1024
    cap = max(512, min(8192, (budget // per_lane_bytes) // 128 * 128))
    if S <= cap:
        return S          # one grid step covers all of S (full-dim block, no masking)
    return cap            # multiple of 128; ragged tail handled by lane masking


def pairwise_mean_dist(z):
    """z: (rows, C, S) -> (rows, rows) mean-over-S pairwise Euclidean distance matrix
    between the channel-softmaxed per-position feature vectors."""
    n_rows, C, S = z.shape
    ts = _pick_s_tile(S, n_rows, C)
    n_tiles = pl.cdiv(S, ts)
    # Leading "parallel" axis lets v7x megacore split the S loop across both
    # TensorCores; degenerates to 1 (and is harmless on 1-TC chips) otherwise.
    num_splits = 2 if n_tiles >= 2 else 1
    tiles_per_split = pl.cdiv(n_tiles, num_splits)

    def in_map(split, t):
        # Clamp the DMA block index; lanes past S are zeroed by the in-kernel mask.
        return (0, 0, jnp.minimum(split * tiles_per_split + t, n_tiles - 1))

    kernel = functools.partial(_pair_dist_kernel, s_total=S,
                               tiles_per_split=tiles_per_split)

    partials = pl.pallas_call(
        kernel,
        out_shape=jax.ShapeDtypeStruct((num_splits, n_rows - 1, n_rows), jnp.float32),
        grid_spec=pltpu.PrefetchScalarGridSpec(
            num_scalar_prefetch=0,
            grid=(num_splits, tiles_per_split),
            in_specs=[pl.BlockSpec((n_rows, C, ts), in_map)],
            out_specs=pl.BlockSpec((1, n_rows - 1, n_rows),
                                   lambda split, t: (split, 0, 0)),
            scratch_shapes=[pltpu.VMEM((n_rows - 1, n_rows, ts), jnp.float32)],
        ),
        compiler_params=pltpu.CompilerParams(
            dimension_semantics=("parallel", "arbitrary"),
            vmem_limit_bytes=32 * 1024 * 1024,
        ),
    )(z)

    per_offset = jnp.sum(partials, axis=0) * (1.0 / S)       # (rows-1, rows)

    # Mirror the upper triangle into the symmetric (rows, rows) matrix; diagonal is 0.
    dist = jnp.zeros((n_rows, n_rows), jnp.float32)
    for o in range(1, n_rows):
        idx_i = np.arange(n_rows - o)
        idx_j = idx_i + o
        vals = per_offset[o - 1, : n_rows - o]
        dist = dist.at[idx_i, idx_j].set(vals)
        dist = dist.at[idx_j, idx_i].set(vals)
    return dist


# ----------------------------------------------------------------------------
# Full NT_Xent forward (matches the PyTorch module semantics)
# ----------------------------------------------------------------------------
def _mask_correlated_samples(batch_size, world_size):
    N = 2 * batch_size * world_size
    mask = np.ones((N, N), dtype=bool)
    np.fill_diagonal(mask, False)
    for i in range(batch_size * world_size):
        mask[i, batch_size + i] = False
        mask[batch_size + i, i] = False
    return mask


@functools.partial(jax.jit, static_argnames=("batch_size", "temperature", "world_size"))
def nt_xent_loss(z_i1, z_i2, z_j1, z_j2, batch_size, temperature=1.0, world_size=1):
    # NOTE: `temperature` is unused in the reference forward pass as well.
    del temperature

    if z_i1.shape[2] * z_i1.shape[3] > z_i2.shape[2] * z_i2.shape[3]:
        z_i2 = bilinear_align_corners(z_i2, z_i1.shape[2], z_i1.shape[3])
        z_j2 = bilinear_align_corners(z_j2, z_i1.shape[2], z_i1.shape[3])
    else:
        z_i1 = bilinear_align_corners(z_i1, z_i2.shape[2], z_i2.shape[3])
        z_j1 = bilinear_align_corners(z_j1, z_i2.shape[2], z_i2.shape[3])

    z_i = jnp.concatenate([z_i1, z_i2], axis=0)              # (B, C, H, W)
    z_j = jnp.concatenate([z_j1, z_j2], axis=0)
    B, C, H, W = z_i.shape
    S = H * W
    N = 2 * batch_size * world_size

    # NCHW -> (rows, C, S) is a pure reshape (no HBM transpose); the kernel does the
    # channel softmax internally, so the reference's NHWC permute is unnecessary.
    z = jnp.concatenate([z_i.reshape(B, C, S), z_j.reshape(B, C, S)], axis=0)

    # Hot path: softmax + mean pairwise Euclidean distance (Pallas kernel).
    euclidean_dist = pairwise_mean_dist(z)                   # (2B, 2B) == (N, N)
    sim = jnp.exp(-euclidean_dist)

    k = batch_size * world_size
    sim_i_j = jnp.diagonal(sim, offset=k)
    sim_j_i = jnp.diagonal(sim, offset=-k)
    positive = jnp.concatenate([sim_i_j, sim_j_i], axis=0).reshape(N, 1)

    mask = _mask_correlated_samples(batch_size, world_size)
    neg_idx = jnp.asarray(np.nonzero(mask.reshape(-1))[0], dtype=jnp.int32)
    negative = jnp.take(sim.reshape(-1), neg_idx).reshape(N, -1)

    logits = jnp.concatenate([positive, negative], axis=1)   # (N, N-1)
    # CrossEntropyLoss(reduction='sum') with all-zero labels, divided by N.
    loss = jnp.sum(jax.nn.logsumexp(logits, axis=1) - logits[:, 0]) / N
    return loss


if __name__ == "__main__":
    key = jax.random.PRNGKey(0)
    k1, k2, k3, k4 = jax.random.split(key, 4)

    b, C = 2, 4                                              # per-view batch, channels
    z_i1 = jax.random.normal(k1, (b, C, 16, 16), jnp.float32)
    z_i2 = jax.random.normal(k2, (b, C, 8, 8), jnp.float32)
    z_j1 = jax.random.normal(k3, (b, C, 16, 16), jnp.float32)
    z_j2 = jax.random.normal(k4, (b, C, 8, 8), jnp.float32)

    # Module's batch_size corresponds to the concatenated z_i batch (2 * b).
    batch_size = 2 * b

    loss = nt_xent_loss(z_i1, z_i2, z_j1, z_j2, batch_size=batch_size,
                        temperature=1.0, world_size=1)
    jax.block_until_ready(loss)
    print("KERNEL_OK")
</pallas_src>

<mosaic_0001>
module attributes {stable_mosaic.version = 11 : i64} {
  func.func @_pair_dist_kernel(%arg0: i32, %arg1: i32, %arg2: memref<8x4x256xf32, #tpu.memory_space<vmem>>, %arg3: memref<1x7x8xf32, #tpu.memory_space<vmem>>, %arg4: memref<7x8x256xf32, #tpu.memory_space<vmem>>) attributes {dimension_semantics = [#tpu.dimension_semantics<parallel>, #tpu.dimension_semantics<arbitrary>], iteration_bounds = array<i64: 1, 1>, scalar_prefetch = 0 : i64, scratch_operands = 1 : i64, tpu.core_type = #tpu.core_type<tc>, window_params = [{transform_indices = @transform_0, window_bounds = array<i64: 8, 4, 256>}, {transform_indices = @transform_1, window_bounds = array<i64: 1, 7, 8>}]} {
    %c0_i32 = arith.constant 0 : i32
    %0 = arith.cmpi eq, %arg1, %c0_i32 : i32
    %1 = arith.extui %0 : i1 to i32
    %c0_i32_0 = arith.constant 0 : i32
    %2 = arith.cmpi ne, %1, %c0_i32_0 : i32
    scf.if %2 {
      %cst_57 = arith.constant 0.000000e+00 : f32
      %135 = vector.broadcast %cst_57 : f32 to vector<7x8x256xf32>
      %c0_58 = arith.constant 0 : index
      %c0_59 = arith.constant 0 : index
      %c0_60 = arith.constant 0 : index
      %136 = vector.load %arg4[%c0_58, %c0_59, %c0_60] : memref<7x8x256xf32, #tpu.memory_space<vmem>>, vector<7x8x256xf32>
      tpu.vector_store %arg4[%c0_58, %c0_59, %c0_60], %135 {strides = array<i32>} : memref<7x8x256xf32, #tpu.memory_space<vmem>>, vector<7x8x256xf32>,
    } else {
    }
    %c0 = arith.constant 0 : index
    %c0_1 = arith.constant 0 : index
    %c0_2 = arith.constant 0 : index
    %3 = vector.load %arg2[%c0, %c0_1, %c0_2] : memref<8x4x256xf32, #tpu.memory_space<vmem>>, vector<8x4x256xf32>
    %cst = arith.constant dense<0xFF800000> : vector<8x256xf32>
    %4 = vector.multi_reduction <maximumf>, %3, %cst [1] : vector<8x4x256xf32> to vector<8x256xf32>
    %5 = vector.shape_cast %4 : vector<8x256xf32> to vector<8x1x256xf32>
    %6 = vector.broadcast %5 : vector<8x1x256xf32> to vector<8x4x256xf32>
    %7 = arith.subf %3, %6 : vector<8x4x256xf32>
    %8 = math.exp %7 : vector<8x4x256xf32>
    %cst_3 = arith.constant dense<0.000000e+00> : vector<8x256xf32>
    %9 = vector.multi_reduction <add>, %8, %cst_3 [1] : vector<8x4x256xf32> to vector<8x256xf32>
    %10 = vector.shape_cast %9 : vector<8x256xf32> to vector<8x1x256xf32>
    %11 = tpu.reciprocal %10 {approx = true} : vector<8x1x256xf32> -> vector<8x1x256xf32>
    %12 = vector.broadcast %11 : vector<8x1x256xf32> to vector<8x4x256xf32>
    %13 = arith.mulf %8, %12 : vector<8x4x256xf32>
    %c1_i32 = arith.constant 1 : i32
    %14 = arith.muli %arg0, %c1_i32 : i32
    %15 = arith.addi %14, %arg1 : i32
    %c256_i32 = arith.constant 256 : i32
    %16 = arith.muli %15, %c256_i32 : i32
    %17 = tpu.iota {dimensions = array<i32: 1>} : vector<1x256xi32>
    %18 = vector.broadcast %16 : i32 to vector<1x256xi32>
    %19 = arith.addi %18, %17 : vector<1x256xi32>
    %c256_i32_4 = arith.constant 256 : i32
    %20 = vector.broadcast %c256_i32_4 : i32 to vector<1x256xi32>
    %21 = arith.cmpi slt, %19, %20 : vector<1x256xi32>
    %22 = vector.extract_strided_slice %13 {offsets = [0, 0, 0], sizes = [7, 4, 256], strides = [1, 1, 1]} : vector<8x4x256xf32> to vector<7x4x256xf32>
    %23 = vector.extract_strided_slice %13 {offsets = [1, 0, 0], sizes = [7, 4, 256], strides = [1, 1, 1]} : vector<8x4x256xf32> to vector<7x4x256xf32>
    %24 = arith.subf %22, %23 : vector<7x4x256xf32>
    %25 = arith.mulf %24, %24 : vector<7x4x256xf32>
    %cst_5 = arith.constant dense<0.000000e+00> : vector<7x256xf32>
    %26 = vector.multi_reduction <add>, %25, %cst_5 [1] : vector<7x4x256xf32> to vector<7x256xf32>
    %27 = math.sqrt %26 : vector<7x256xf32>
    %cst_6 = arith.constant 0.000000e+00 : f32
    %28 = vector.shape_cast %21 : vector<1x256xi1> to vector<1x256xi1>
    %29 = vector.broadcast %28 : vector<1x256xi1> to vector<7x256xi1>
    %30 = vector.broadcast %cst_6 : f32 to vector<7x256xf32>
    %31 = arith.select %29, %27, %30 : vector<7x256xi1>, vector<7x256xf32>
    %c0_7 = arith.constant 0 : index
    %c0_8 = arith.constant 0 : index
    %c0_9 = arith.constant 0 : index
    %32 = vector.load %arg4[%c0_7, %c0_8, %c0_9] : memref<7x8x256xf32, #tpu.memory_space<vmem>>, vector<1x7x256xf32>
    %33 = vector.shape_cast %32 : vector<1x7x256xf32> to vector<7x256xf32>
    %34 = arith.addf %33, %31 : vector<7x256xf32>
    %c0_10 = arith.constant 0 : index
    %c0_11 = arith.constant 0 : index
    %c0_12 = arith.constant 0 : index
    %35 = vector.load %arg4[%c0_10, %c0_11, %c0_12] : memref<7x8x256xf32, #tpu.memory_space<vmem>>, vector<1x7x256xf32>
    %36 = vector.shape_cast %35 : vector<1x7x256xf32> to vector<7x256xf32>
    %37 = vector.shape_cast %34 : vector<7x256xf32> to vector<1x7x256xf32>
    tpu.vector_store %arg4[%c0_10, %c0_11, %c0_12], %37 {strides = array<i32>} : memref<7x8x256xf32, #tpu.memory_space<vmem>>, vector<1x7x256xf32>,
    %38 = vector.extract_strided_slice %13 {offsets = [0, 0, 0], sizes = [6, 4, 256], strides = [1, 1, 1]} : vector<8x4x256xf32> to vector<6x4x256xf32>
    %39 = vector.extract_strided_slice %13 {offsets = [2, 0, 0], sizes = [6, 4, 256], strides = [1, 1, 1]} : vector<8x4x256xf32> to vector<6x4x256xf32>
    %40 = arith.subf %38, %39 : vector<6x4x256xf32>
    %41 = arith.mulf %40, %40 : vector<6x4x256xf32>
    %cst_13 = arith.constant dense<0.000000e+00> : vector<6x256xf32>
    %42 = vector.multi_reduction <add>, %41, %cst_13 [1] : vector<6x4x256xf32> to vector<6x256xf32>
    %43 = math.sqrt %42 : vector<6x256xf32>
    %cst_14 = arith.constant 0.000000e+00 : f32
    %44 = vector.shape_cast %21 : vector<1x256xi1> to vector<1x256xi1>
    %45 = vector.broadcast %44 : vector<1x256xi1> to vector<6x256xi1>
    %46 = vector.broadcast %cst_14 : f32 to vector<6x256xf32>
    %47 = arith.select %45, %43, %46 : vector<6x256xi1>, vector<6x256xf32>
    %c1 = arith.constant 1 : index
    %c0_15 = arith.constant 0 : index
    %c0_16 = arith.constant 0 : index
    %48 = vector.load %arg4[%c1, %c0_15, %c0_16] : memref<7x8x256xf32, #tpu.memory_space<vmem>>, vector<1x6x256xf32>
    %49 = vector.shape_cast %48 : vector<1x6x256xf32> to vector<6x256xf32>
    %50 = arith.addf %49, %47 : vector<6x256xf32>
    %c1_17 = arith.constant 1 : index
    %c0_18 = arith.constant 0 : index
    %c0_19 = arith.constant 0 : index
    %51 = vector.load %arg4[%c1_17, %c0_18, %c0_19] : memref<7x8x256xf32, #tpu.memory_space<vmem>>, vector<1x6x256xf32>
    %52 = vector.shape_cast %51 : vector<1x6x256xf32> to vector<6x256xf32>
    %53 = vector.shape_cast %50 : vector<6x256xf32> to vector<1x6x256xf32>
    tpu.vector_store %arg4[%c1_17, %c0_18, %c0_19], %53 {strides = array<i32>} : memref<7x8x256xf32, #tpu.memory_space<vmem>>, vector<1x6x256xf32>,
    %54 = vector.extract_strided_slice %13 {offsets = [0, 0, 0], sizes = [5, 4, 256], strides = [1, 1, 1]} : vector<8x4x256xf32> to vector<5x4x256xf32>
    %55 = vector.extract_strided_slice %13 {offsets = [3, 0, 0], sizes = [5, 4, 256], strides = [1, 1, 1]} : vector<8x4x256xf32> to vector<5x4x256xf32>
    %56 = arith.subf %54, %55 : vector<5x4x256xf32>
    %57 = arith.mulf %56, %56 : vector<5x4x256xf32>
    %cst_20 = arith.constant dense<0.000000e+00> : vector<5x256xf32>
    %58 = vector.multi_reduction <add>, %57, %cst_20 [1] : vector<5x4x256xf32> to vector<5x256xf32>
    %59 = math.sqrt %58 : vector<5x256xf32>
    %cst_21 = arith.constant 0.000000e+00 : f32
    %60 = vector.shape_cast %21 : vector<1x256xi1> to vector<1x256xi1>
    %61 = vector.broadcast %60 : vector<1x256xi1> to vector<5x256xi1>
    %62 = vector.broadcast %cst_21 : f32 to vector<5x256xf32>
    %63 = arith.select %61, %59, %62 : vector<5x256xi1>, vector<5x256xf32>
    %c2 = arith.constant 2 : index
    %c0_22 = arith.constant 0 : index
    %c0_23 = arith.constant 0 : index
    %64 = vector.load %arg4[%c2, %c0_22, %c0_23] : memref<7x8x256xf32, #tpu.memory_space<vmem>>, vector<1x5x256xf32>
    %65 = vector.shape_cast %64 : vector<1x5x256xf32> to vector<5x256xf32>
    %66 = arith.addf %65, %63 : vector<5x256xf32>
    %c2_24 = arith.constant 2 : index
    %c0_25 = arith.constant 0 : index
    %c0_26 = arith.constant 0 : index
    %67 = vector.load %arg4[%c2_24, %c0_25, %c0_26] : memref<7x8x256xf32, #tpu.memory_space<vmem>>, vector<1x5x256xf32>
    %68 = vector.shape_cast %67 : vector<1x5x256xf32> to vector<5x256xf32>
    %69 = vector.shape_cast %66 : vector<5x256xf32> to vector<1x5x256xf32>
    tpu.vector_store %arg4[%c2_24, %c0_25, %c0_26], %69 {strides = array<i32>} : memref<7x8x256xf32, #tpu.memory_space<vmem>>, vector<1x5x256xf32>,
    %70 = vector.extract_strided_slice %13 {offsets = [0, 0, 0], sizes = [4, 4, 256], strides = [1, 1, 1]} : vector<8x4x256xf32> to vector<4x4x256xf32>
    %71 = vector.extract_strided_slice %13 {offsets = [4, 0, 0], sizes = [4, 4, 256], strides = [1, 1, 1]} : vector<8x4x256xf32> to vector<4x4x256xf32>
    %72 = arith.subf %70, %71 : vector<4x4x256xf32>
    %73 = arith.mulf %72, %72 : vector<4x4x256xf32>
    %cst_27 = arith.constant dense<0.000000e+00> : vector<4x256xf32>
    %74 = vector.multi_reduction <add>, %73, %cst_27 [1] : vector<4x4x256xf32> to vector<4x256xf32>
    %75 = math.sqrt %74 : vector<4x256xf32>
    %cst_28 = arith.constant 0.000000e+00 : f32
    %76 = vector.shape_cast %21 : vector<1x256xi1> to vector<1x256xi1>
    %77 = vector.broadcast %76 : vector<1x256xi1> to vector<4x256xi1>
    %78 = vector.broadcast %cst_28 : f32 to vector<4x256xf32>
    %79 = arith.select %77, %75, %78 : vector<4x256xi1>, vector<4x256xf32>
    %c3 = arith.constant 3 : index
    %c0_29 = arith.constant 0 : index
    %c0_30 = arith.constant 0 : index
    %80 = vector.load %arg4[%c3, %c0_29, %c0_30] : memref<7x8x256xf32, #tpu.memory_space<vmem>>, vector<1x4x256xf32>
    %81 = vector.shape_cast %80 : vector<1x4x256xf32> to vector<4x256xf32>
    %82 = arith.addf %81, %79 : vector<4x256xf32>
    %c3_31 = arith.constant 3 : index
    %c0_32 = arith.constant 0 : index
    %c0_33 = arith.constant 0 : index
    %83 = vector.load %arg4[%c3_31, %c0_32, %c0_33] : memref<7x8x256xf32, #tpu.memory_space<vmem>>, vector<1x4x256xf32>
    %84 = vector.shape_cast %83 : vector<1x4x256xf32> to vector<4x256xf32>
    %85 = vector.shape_cast %82 : vector<4x256xf32> to vector<1x4x256xf32>
    tpu.vector_store %arg4[%c3_31, %c0_32, %c0_33], %85 {strides = array<i32>} : memref<7x8x256xf32, #tpu.memory_space<vmem>>, vector<1x4x256xf32>,
    %86 = vector.extract_strided_slice %13 {offsets = [0, 0, 0], sizes = [3, 4, 256], strides = [1, 1, 1]} : vector<8x4x256xf32> to vector<3x4x256xf32>
    %87 = vector.extract_strided_slice %13 {offsets = [5, 0, 0], sizes = [3, 4, 256], strides = [1, 1, 1]} : vector<8x4x256xf32> to vector<3x4x256xf32>
    %88 = arith.subf %86, %87 : vector<3x4x256xf32>
    %89 = arith.mulf %88, %88 : vector<3x4x256xf32>
    %cst_34 = arith.constant dense<0.000000e+00> : vector<3x256xf32>
    %90 = vector.multi_reduction <add>, %89, %cst_34 [1] : vector<3x4x256xf32> to vector<3x256xf32>
    %91 = math.sqrt %90 : vector<3x256xf32>
    %cst_35 = arith.constant 0.000000e+00 : f32
    %92 = vector.shape_cast %21 : vector<1x256xi1> to vector<1x256xi1>
    %93 = vector.broadcast %92 : vector<1x256xi1> to vector<3x256xi1>
    %94 = vector.broadcast %cst_35 : f32 to vector<3x256xf32>
    %95 = arith.select %93, %91, %94 : vector<3x256xi1>, vector<3x256xf32>
    %c4 = arith.constant 4 : index
    %c0_36 = arith.constant 0 : index
    %c0_37 = arith.constant 0 : index
    %96 = vector.load %arg4[%c4, %c0_36, %c0_37] : memref<7x8x256xf32, #tpu.memory_space<vmem>>, vector<1x3x256xf32>
    %97 = vector.shape_cast %96 : vector<1x3x256xf32> to vector<3x256xf32>
    %98 = arith.addf %97, %95 : vector<3x256xf32>
    %c4_38 = arith.constant 4 : index
    %c0_39 = arith.constant 0 : index
    %c0_40 = arith.constant 0 : index
    %99 = vector.load %arg4[%c4_38, %c0_39, %c0_40] : memref<7x8x256xf32, #tpu.memory_space<vmem>>, vector<1x3x256xf32>
    %100 = vector.shape_cast %99 : vector<1x3x256xf32> to vector<3x256xf32>
    %101 = vector.shape_cast %98 : vector<3x256xf32> to vector<1x3x256xf32>
    tpu.vector_store %arg4[%c4_38, %c0_39, %c0_40], %101 {strides = array<i32>} : memref<7x8x256xf32, #tpu.memory_space<vmem>>, vector<1x3x256xf32>,
    %102 = vector.extract_strided_slice %13 {offsets = [0, 0, 0], sizes = [2, 4, 256], strides = [1, 1, 1]} : vector<8x4x256xf32> to vector<2x4x256xf32>
    %103 = vector.extract_strided_slice %13 {offsets = [6, 0, 0], sizes = [2, 4, 256], strides = [1, 1, 1]} : vector<8x4x256xf32> to vector<2x4x256xf32>
    %104 = arith.subf %102, %103 : vector<2x4x256xf32>
    %105 = arith.mulf %104, %104 : vector<2x4x256xf32>
    %cst_41 = arith.constant dense<0.000000e+00> : vector<2x256xf32>
    %106 = vector.multi_reduction <add>, %105, %cst_41 [1] : vector<2x4x256xf32> to vector<2x256xf32>
    %107 = math.sqrt %106 : vector<2x256xf32>
    %cst_42 = arith.constant 0.000000e+00 : f32
    %108 = vector.shape_cast %21 : vector<1x256xi1> to vector<1x256xi1>
    %109 = vector.broadcast %108 : vector<1x256xi1> to vector<2x256xi1>
    %110 = vector.broadcast %cst_42 : f32 to vector<2x256xf32>
    %111 = arith.select %109, %107, %110 : vector<2x256xi1>, vector<2x256xf32>
    %c5 = arith.constant 5 : index
    %c0_43 = arith.constant 0 : index
    %c0_44 = arith.constant 0 : index
    %112 = vector.load %arg4[%c5, %c0_43, %c0_44] : memref<7x8x256xf32, #tpu.memory_space<vmem>>, vector<1x2x256xf32>
    %113 = vector.shape_cast %112 : vector<1x2x256xf32> to vector<2x256xf32>
    %114 = arith.addf %113, %111 : vector<2x256xf32>
    %c5_45 = arith.constant 5 : index
    %c0_46 = arith.constant 0 : index
    %c0_47 = arith.constant 0 : index
    %115 = vector.load %arg4[%c5_45, %c0_46, %c0_47] : memref<7x8x256xf32, #tpu.memory_space<vmem>>, vector<1x2x256xf32>
    %116 = vector.shape_cast %115 : vector<1x2x256xf32> to vector<2x256xf32>
    %117 = vector.shape_cast %114 : vector<2x256xf32> to vector<1x2x256xf32>
    tpu.vector_store %arg4[%c5_45, %c0_46, %c0_47], %117 {strides = array<i32>} : memref<7x8x256xf32, #tpu.memory_space<vmem>>, vector<1x2x256xf32>,
    %118 = vector.extract_strided_slice %13 {offsets = [0, 0, 0], sizes = [1, 4, 256], strides = [1, 1, 1]} : vector<8x4x256xf32> to vector<1x4x256xf32>
    %119 = vector.extract_strided_slice %13 {offsets = [7, 0, 0], sizes = [1, 4, 256], strides = [1, 1, 1]} : vector<8x4x256xf32> to vector<1x4x256xf32>
    %120 = arith.subf %118, %119 : vector<1x4x256xf32>
    %121 = arith.mulf %120, %120 : vector<1x4x256xf32>
    %cst_48 = arith.constant dense<0.000000e+00> : vector<1x256xf32>
    %122 = vector.multi_reduction <add>, %121, %cst_48 [1] : vector<1x4x256xf32> to vector<1x256xf32>
    %123 = math.sqrt %122 : vector<1x256xf32>
    %cst_49 = arith.constant 0.000000e+00 : f32
    %124 = vector.broadcast %cst_49 : f32 to vector<1x256xf32>
    %125 = arith.select %21, %123, %124 : vector<1x256xi1>, vector<1x256xf32>
    %c6 = arith.constant 6 : index
    %c0_50 = arith.constant 0 : index
    %c0_51 = arith.constant 0 : index
    %126 = vector.load %arg4[%c6, %c0_50, %c0_51] : memref<7x8x256xf32, #tpu.memory_space<vmem>>, vector<1x1x256xf32>
    %127 = vector.shape_cast %126 : vector<1x1x256xf32> to vector<1x256xf32>
    %128 = arith.addf %127, %125 : vector<1x256xf32>
    %c6_52 = arith.constant 6 : index
    %c0_53 = arith.constant 0 : index
    %c0_54 = arith.constant 0 : index
    %129 = vector.load %arg4[%c6_52, %c0_53, %c0_54] : memref<7x8x256xf32, #tpu.memory_space<vmem>>, vector<1x1x256xf32>
    %130 = vector.shape_cast %129 : vector<1x1x256xf32> to vector<1x256xf32>
    %131 = vector.shape_cast %128 : vector<1x256xf32> to vector<1x1x256xf32>
    tpu.vector_store %arg4[%c6_52, %c0_53, %c0_54], %131 {strides = array<i32>} : memref<7x8x256xf32, #tpu.memory_space<vmem>>, vector<1x1x256xf32>,
    %c0_i32_55 = arith.constant 0 : i32
    %132 = arith.cmpi eq, %arg1, %c0_i32_55 : i32
    %133 = arith.extui %132 : i1 to i32
    %c0_i32_56 = arith.constant 0 : i32
    %134 = arith.cmpi ne, %133, %c0_i32_56 : i32
    scf.if %134 {
      %c0_57 = arith.constant 0 : index
      %c0_58 = arith.constant 0 : index
      %c0_59 = arith.constant 0 : index
      %135 = vector.load %arg4[%c0_57, %c0_58, %c0_59] : memref<7x8x256xf32, #tpu.memory_space<vmem>>, vector<7x8x256xf32>
      %cst_60 = arith.constant dense<0.000000e+00> : vector<7x8xf32>
      %136 = vector.multi_reduction <add>, %135, %cst_60 [2] : vector<7x8x256xf32> to vector<7x8xf32>
      %137 = vector.shape_cast %136 : vector<7x8xf32> to vector<1x7x8xf32>
      %c0_61 = arith.constant 0 : index
      %c0_62 = arith.constant 0 : index
      %c0_63 = arith.constant 0 : index
      %138 = vector.load %arg3[%c0_61, %c0_62, %c0_63] : memref<1x7x8xf32, #tpu.memory_space<vmem>>, vector<1x7x8xf32>
      tpu.vector_store %arg3[%c0_61, %c0_62, %c0_63], %137 {strides = array<i32>} : memref<1x7x8xf32, #tpu.memory_space<vmem>>, vector<1x7x8xf32>,
    } else {
    }
    return
  }
  func.func @transform_0(%arg0: i32, %arg1: i32) -> (i32, i32, i32) {
    %c1_i32 = arith.constant 1 : i32
    %0 = arith.muli %arg0, %c1_i32 : i32
    %1 = arith.addi %0, %arg1 : i32
    %c0_i32 = arith.constant 0 : i32
    %2 = arith.minsi %1, %c0_i32 : i32
    %c0_i32_0 = arith.constant 0 : i32
    %c0_i32_1 = arith.constant 0 : i32
    %c0_i32_2 = arith.constant 0 : i32
    return %c0_i32_0, %c0_i32_1, %2 : i32, i32, i32
  }
  func.func @transform_1(%arg0: i32, %arg1: i32) -> (i32, i32, i32) {
    %c0_i32 = arith.constant 0 : i32
    %c0_i32_0 = arith.constant 0 : i32
    %c0_i32_1 = arith.constant 0 : i32
    return %arg0, %c0_i32, %c0_i32_0 : i32, i32, i32
  }
}

</mosaic_0001>

<llo_original>
// kernel: nt_xent_loss.1
$region0: #{nt_xent_loss.1}
  #allocation0 [shape = 'u32[]', space=smem, size = 0x4, offset = 0x4, fixed_abs, tag = 'smem constant byte address 0x4 - core index']
  #allocation1 [shape = 'u32[144,128]{1,0:T(1,128)}', space=vmem, size = 0x12000, scoped, tag = 'internal scratch']
  #allocation2 [shape = 'f32[7,8,256]{2,1,0:T(8,128)}', space=vmem, size = 0xe000, scoped, tag = 'scratch operand']
  %s0 = inlined_call_operand.vmem [shape: f32[8,4,256], index: 0, kind: input, shape index: {}]
  %s1 = inlined_call_operand.vmem [shape: f32[1,7,8], index: 1, kind: output, shape index: {}]
  %s2 = sld [smem:[#allocation0]]
  $region22: #{nt_xent_loss.1} parent=0
    _
  %s4 = ssub.s32 1, %s2
  %s5 = scalar_select 0, %s4, %s2
  // Predicated region
  $region2: #{nt_xent_loss.1} parent=0 // pred_check
    _
  $region3: #{nt_xent_loss.1} parent=0 // pred_check_branch
    %7 = sbr.rel (0) target = $region5
  $region4: #{nt_xent_loss.1} parent=0 // pred_region
    %s8 = sadd.s32 0, 0
    %p9 = scmp.lt.s32.totalorder %s8, 0
    %s10 = scalar_select %p9, %s8, 0
    %s11 = smul.u32 2, %s10
    %p12 = scmp.lt.s32.totalorder %s11, 1
    %s13 = scalar_select %p12, %s11, 1
    %s14 = smul.addr %s13, 4
    %s15 = scalar_lea.vmem %s0, %s14
    %s16 = sadd.s32 0, 0
    %p17 = scmp.lt.s32.totalorder %s16, 0
    %s18 = scalar_select %p17, %s16, 0
    %s19 = smul.u32 2, %s18
  $region5: #{nt_xent_loss.1} parent=0 // pred_fallthru
    _
  %s20 = sadd.s32 0, 0
  %p21 = scmp.lt.s32.totalorder %s20, 0
  %s22 = scalar_select %p21, %s20, 0
  %s23 = smul.u32 2, %s22
  %p24 = scmp.lt.s32.totalorder %s23, 1
  %s25 = scalar_select %p24, %s23, 1
  %s26 = smul.addr %s25, 4
  %s27 = scalar_lea.vmem %s0, %s26
  %s28 = sadd.s32 0, 0
  %p29 = scmp.lt.s32.totalorder %s28, 0
  %s30 = scalar_select %p29, %s28, 0
  %s31 = smul.u32 2, %s30
  %p32 = scmp.lt.s32.totalorder %s31, 1
  %s33 = scalar_select %p32, %s31, 1
  %s34 = smul.addr %s33, 4
  %s35 = scalar_lea.vmem %s0, %s34
  %s36 = sadd.s32 0, 0
  %p37 = scmp.lt.s32.totalorder %s36, 0
  %s38 = scalar_select %p37, %s36, 0
  %s39 = smul.u32 2, %s38
  %p40 = scmp.eq.s32.totalorder 0, 0
  // Predicated region
  $region6: #{nt_xent_loss.1} parent=0 // pred_check
    %p41 = pneg %p40
  $region7: #{nt_xent_loss.1} parent=0 // pred_check_branch
    %43 = sbr.rel (%p41) target = $region9
  $region8: #{nt_xent_loss.1} parent=0 // pred_region
    %44 = vst [vmem:[#allocation2] sm:$0xff] 0.0
    %45 = vst [vmem:[#allocation2 + $0x8] sm:$0xff] 0.0
    %46 = vst [vmem:[#allocation2 + $0x10] sm:$0xff] 0.0
    %47 = vst [vmem:[#allocation2 + $0x18] sm:$0xff] 0.0
    %48 = vst [vmem:[#allocation2 + $0x20] sm:$0xff] 0.0
    %49 = vst [vmem:[#allocation2 + $0x28] sm:$0xff] 0.0
    %50 = vst [vmem:[#allocation2 + $0x30] sm:$0xff] 0.0
    %51 = vst [vmem:[#allocation2 + $0x38] sm:$0xff] 0.0
    %52 = vst [vmem:[#allocation2 + $0x40] sm:$0xff] 0.0
    %53 = vst [vmem:[#allocation2 + $0x48] sm:$0xff] 0.0
    %54 = vst [vmem:[#allocation2 + $0x50] sm:$0xff] 0.0
    %55 = vst [vmem:[#allocation2 + $0x58] sm:$0xff] 0.0
    %56 = vst [vmem:[#allocation2 + $0x60] sm:$0xff] 0.0
    %57 = vst [vmem:[#allocation2 + $0x68] sm:$0xff] 0.0
  $region9: #{nt_xent_loss.1} parent=0 // pred_fallthru
    _
  %v58 = vld [vmem:[%s35] sm:$0xff]
  %v59 = vld [vmem:[%s35 + $0x8] sm:$0xff]
  %v60 = vld [vmem:[%s35 + $0x10] sm:$0xff]
  %v61 = vld [vmem:[%s35 + $0x18] sm:$0xff]
  %v62 = vld [vmem:[%s35 + $0x20] sm:$0xff]
  %v63 = vld [vmem:[%s35 + $0x28] sm:$0xff]
  %v64 = vld [vmem:[%s35 + $0x30] sm:$0xff]
  %v65 = vld [vmem:[%s35 + $0x38] sm:$0xff]
  %v74 = vcombine.high %v58, %v58
  %v75 = vcombine.high %v59, %v59
  %v76 = vcombine.high %v60, %v60
  %v77 = vcombine.high %v61, %v61
  %v78 = vcombine.high %v62, %v62
  %v79 = vcombine.high %v63, %v63
  %v80 = vcombine.high %v64, %v64
  %v81 = vcombine.high %v65, %v65
  %vm90 = vcmask 1043456
  %v91 = vsel %vm90, %v58, -inf
  %v92 = vrot.slane %v91, 4
  %v93 = vmax.f32 %v91, %v92
  %v94 = vrot.slane %v93, 2
  %v95 = vmax.f32 %v93, %v94
  %v96 = vrot.slane %v95, 1
  %v97 = vmax.f32 %v95, %v96
  %v98 = vsel %vm90, %v74, -inf
  %v99 = vrot.slane %v98, 4
  %v100 = vmax.f32 %v98, %v99
  %v101 = vrot.slane %v100, 2
  %v102 = vmax.f32 %v100, %v101
  %v103 = vrot.slane %v102, 1
  %v104 = vmax.f32 %v102, %v103
  %v105 = vsel %vm90, %v59, -inf
  %v106 = vrot.slane %v105, 4
  %v107 = vmax.f32 %v105, %v106
  %v108 = vrot.slane %v107, 2
  %v109 = vmax.f32 %v107, %v108
  %v110 = vrot.slane %v109, 1
  %v111 = vmax.f32 %v109, %v110
  %v112 = vsel %vm90, %v75, -inf
  %v113 = vrot.slane %v112, 4
  %v114 = vmax.f32 %v112, %v113
  %v115 = vrot.slane %v114, 2
  %v116 = vmax.f32 %v114, %v115
  %v117 = vrot.slane %v116, 1
  %v118 = vmax.f32 %v116, %v117
  %v119 = vsel %vm90, %v60, -inf
  %v120 = vrot.slane %v119, 4
  %v121 = vmax.f32 %v119, %v120
  %v122 = vrot.slane %v121, 2
  %v123 = vmax.f32 %v121, %v122
  %v124 = vrot.slane %v123, 1
  %v125 = vmax.f32 %v123, %v124
  %v126 = vsel %vm90, %v76, -inf
  %v127 = vrot.slane %v126, 4
  %v128 = vmax.f32 %v126, %v127
  %v129 = vrot.slane %v128, 2
  %v130 = vmax.f32 %v128, %v129
  %v131 = vrot.slane %v130, 1
  %v132 = vmax.f32 %v130, %v131
  %v133 = vsel %vm90, %v61, -inf
  %v134 = vrot.slane %v133, 4
  %v135 = vmax.f32 %v133, %v134
  %v136 = vrot.slane %v135, 2
  %v137 = vmax.f32 %v135, %v136
  %v138 = vrot.slane %v137, 1
  %v139 = vmax.f32 %v137, %v138
  %v140 = vsel %vm90, %v77, -inf
  %v141 = vrot.slane %v140, 4
  %v142 = vmax.f32 %v140, %v141
  %v143 = vrot.slane %v142, 2
  %v144 = vmax.f32 %v142, %v143
  %v145 = vrot.slane %v144, 1
  %v146 = vmax.f32 %v144, %v145
  %v147 = vsel %vm90, %v62, -inf
  %v148 = vrot.slane %v147, 4
  %v149 = vmax.f32 %v147, %v148
  %v150 = vrot.slane %v149, 2
  %v151 = vmax.f32 %v149, %v150
  %v152 = vrot.slane %v151, 1
  %v153 = vmax.f32 %v151, %v152
  %v154 = vsel %vm90, %v78, -inf
  %v155 = vrot.slane %v154, 4
  %v156 = vmax.f32 %v154, %v155
  %v157 = vrot.slane %v156, 2
  %v158 = vmax.f32 %v156, %v157
  %v159 = vrot.slane %v158, 1
  %v160 = vmax.f32 %v158, %v159
  %v161 = vsel %vm90, %v63, -inf
  %v162 = vrot.slane %v161, 4
  %v163 = vmax.f32 %v161, %v162
  %v164 = vrot.slane %v163, 2
  %v165 = vmax.f32 %v163, %v164
  %v166 = vrot.slane %v165, 1
  %v167 = vmax.f32 %v165, %v166
  %v168 = vsel %vm90, %v79, -inf
  %v169 = vrot.slane %v168, 4
  %v170 = vmax.f32 %v168, %v169
  %v171 = vrot.slane %v170, 2
  %v172 = vmax.f32 %v170, %v171
  %v173 = vrot.slane %v172, 1
  %v174 = vmax.f32 %v172, %v173
  %v175 = vsel %vm90, %v64, -inf
  %v176 = vrot.slane %v175, 4
  %v177 = vmax.f32 %v175, %v176
  %v178 = vrot.slane %v177, 2
  %v179 = vmax.f32 %v177, %v178
  %v180 = vrot.slane %v179, 1
  %v181 = vmax.f32 %v179, %v180
  %v182 = vsel %vm90, %v80, -inf
  %v183 = vrot.slane %v182, 4
  %v184 = vmax.f32 %v182, %v183
  %v185 = vrot.slane %v184, 2
  %v186 = vmax.f32 %v184, %v185
  %v187 = vrot.slane %v186, 1
  %v188 = vmax.f32 %v186, %v187
  %v189 = vsel %vm90, %v65, -inf
  %v190 = vrot.slane %v189, 4
  %v191 = vmax.f32 %v189, %v190
  %v192 = vrot.slane %v191, 2
  %v193 = vmax.f32 %v191, %v192
  %v194 = vrot.slane %v193, 1
  %v195 = vmax.f32 %v193, %v194
  %v196 = vsel %vm90, %v81, -inf
  %v197 = vrot.slane %v196, 4
  %v198 = vmax.f32 %v196, %v197
  %v199 = vrot.slane %v198, 2
  %v200 = vmax.f32 %v198, %v199
  %v201 = vrot.slane %v200, 1
  %v202 = vmax.f32 %v200, %v201
  %v219 = vcombine.low %v97, %v104
  %v220 = vcombine.low %v111, %v118
  %v221 = vcombine.low %v125, %v132
  %v222 = vcombine.low %v139, %v146
  %v223 = vcombine.low %v153, %v160
  %v224 = vcombine.low %v167, %v174
  %v225 = vcombine.low %v181, %v188
  %v226 = vcombine.low %v195, %v202
  %v235 = vsub.f32 %v58, %v219
  %v236 = vsub.f32 %v59, %v220
  %v237 = vsub.f32 %v60, %v221
  %v238 = vsub.f32 %v61, %v222
  %v239 = vsub.f32 %v62, %v223
  %v240 = vsub.f32 %v63, %v224
  %v241 = vsub.f32 %v64, %v225
  %v242 = vsub.f32 %v65, %v226
  %v243 = vmul.f32 %v235, 1.442695
  %v244 = vpow.pop %v243
  %v245 = vmul.f32 %v236, 1.442695
  %v246 = vpow.pop %v245
  %v247 = vmul.f32 %v237, 1.442695
  %v248 = vpow.pop %v247
  %v249 = vmul.f32 %v238, 1.442695
  %v250 = vpow.pop %v249
  %v251 = vmul.f32 %v239, 1.442695
  %v252 = vpow.pop %v251
  %v253 = vmul.f32 %v240, 1.442695
  %v254 = vpow.pop %v253
  %v255 = vmul.f32 %v241, 1.442695
  %v256 = vpow.pop %v255
  %v257 = vmul.f32 %v242, 1.442695
  %v258 = vpow.pop %v257
  %v267 = vcombine.high %v244, %v244
  %v268 = vcombine.high %v246, %v246
  %v269 = vcombine.high %v248, %v248
  %v270 = vcombine.high %v250, %v250
  %v271 = vcombine.high %v252, %v252
  %v272 = vcombine.high %v254, %v254
  %v273 = vcombine.high %v256, %v256
  %v274 = vcombine.high %v258, %v258
  %v283 = vsel %vm90, %v244, 0.0
  %v284 = vrot.slane %v283, 4
  %v285 = vadd.f32 %v283, %v284
  %v286 = vrot.slane %v285, 2
  %v287 = vadd.f32 %v285, %v286
  %v288 = vrot.slane %v287, 1
  %v289 = vadd.f32 %v287, %v288
  %v290 = vsel %vm90, %v267, 0.0
  %v291 = vrot.slane %v290, 4
  %v292 = vadd.f32 %v290, %v291
  %v293 = vrot.slane %v292, 2
  %v294 = vadd.f32 %v292, %v293
  %v295 = vrot.slane %v294, 1
  %v296 = vadd.f32 %v294, %v295
  %v297 = vsel %vm90, %v246, 0.0
  %v298 = vrot.slane %v297, 4
  %v299 = vadd.f32 %v297, %v298
  %v300 = vrot.slane %v299, 2
  %v301 = vadd.f32 %v299, %v300
  %v302 = vrot.slane %v301, 1
  %v303 = vadd.f32 %v301, %v302
  %v304 = vsel %vm90, %v268, 0.0
  %v305 = vrot.slane %v304, 4
  %v306 = vadd.f32 %v304, %v305
  %v307 = vrot.slane %v306, 2
  %v308 = vadd.f32 %v306, %v307
  %v309 = vrot.slane %v308, 1
  %v310 = vadd.f32 %v308, %v309
  %v311 = vsel %vm90, %v248, 0.0
  %v312 = vrot.slane %v311, 4
  %v313 = vadd.f32 %v311, %v312
  %v314 = vrot.slane %v313, 2
  %v315 = vadd.f32 %v313, %v314
  %v316 = vrot.slane %v315, 1
  %v317 = vadd.f32 %v315, %v316
  %v318 = vsel %vm90, %v269, 0.0
  %v319 = vrot.slane %v318, 4
  %v320 = vadd.f32 %v318, %v319
  %v321 = vrot.slane %v320, 2
  %v322 = vadd.f32 %v320, %v321
  %v323 = vrot.slane %v322, 1
  %v324 = vadd.f32 %v322, %v323
  %v325 = vsel %vm90, %v250, 0.0
  %v326 = vrot.slane %v325, 4
  %v327 = vadd.f32 %v325, %v326
  %v328 = vrot.slane %v327, 2
  %v329 = vadd.f32 %v327, %v328
  %v330 = vrot.slane %v329, 1
  %v331 = vadd.f32 %v329, %v330
  %v332 = vsel %vm90, %v270, 0.0
  %v333 = vrot.slane %v332, 4
  %v334 = vadd.f32 %v332, %v333
  %v335 = vrot.slane %v334, 2
  %v336 = vadd.f32 %v334, %v335
  %v337 = vrot.slane %v336, 1
  %v338 = vadd.f32 %v336, %v337
  %v339 = vsel %vm90, %v252, 0.0
  %v340 = vrot.slane %v339, 4
  %v341 = vadd.f32 %v339, %v340
  %v342 = vrot.slane %v341, 2
  %v343 = vadd.f32 %v341, %v342
  %v344 = vrot.slane %v343, 1
  %v345 = vadd.f32 %v343, %v344
  %v346 = vsel %vm90, %v271, 0.0
  %v347 = vrot.slane %v346, 4
  %v348 = vadd.f32 %v346, %v347
  %v349 = vrot.slane %v348, 2
  %v350 = vadd.f32 %v348, %v349
  %v351 = vrot.slane %v350, 1
  %v352 = vadd.f32 %v350, %v351
  %v353 = vsel %vm90, %v254, 0.0
  %v354 = vrot.slane %v353, 4
  %v355 = vadd.f32 %v353, %v354
  %v356 = vrot.slane %v355, 2
  %v357 = vadd.f32 %v355, %v356
  %v358 = vrot.slane %v357, 1
  %v359 = vadd.f32 %v357, %v358
  %v360 = vsel %vm90, %v272, 0.0
  %v361 = vrot.slane %v360, 4
  %v362 = vadd.f32 %v360, %v361
  %v363 = vrot.slane %v362, 2
  %v364 = vadd.f32 %v362, %v363
  %v365 = vrot.slane %v364, 1
  %v366 = vadd.f32 %v364, %v365
  %v367 = vsel %vm90, %v256, 0.0
  %v368 = vrot.slane %v367, 4
  %v369 = vadd.f32 %v367, %v368
  %v370 = vrot.slane %v369, 2
  %v371 = vadd.f32 %v369, %v370
  %v372 = vrot.slane %v371, 1
  %v373 = vadd.f32 %v371, %v372
  %v374 = vsel %vm90, %v273, 0.0
  %v375 = vrot.slane %v374, 4
  %v376 = vadd.f32 %v374, %v375
  %v377 = vrot.slane %v376, 2
  %v378 = vadd.f32 %v376, %v377
  %v379 = vrot.slane %v378, 1
  %v380 = vadd.f32 %v378, %v379
  %v381 = vsel %vm90, %v258, 0.0
  %v382 = vrot.slane %v381, 4
  %v383 = vadd.f32 %v381, %v382
  %v384 = vrot.slane %v383, 2
  %v385 = vadd.f32 %v383, %v384
  %v386 = vrot.slane %v385, 1
  %v387 = vadd.f32 %v385, %v386
  %v388 = vsel %vm90, %v274, 0.0
  %v389 = vrot.slane %v388, 4
  %v390 = vadd.f32 %v388, %v389
  %v391 = vrot.slane %v390, 2
  %v392 = vadd.f32 %v390, %v391
  %v393 = vrot.slane %v392, 1
  %v394 = vadd.f32 %v392, %v393
  %v395 = vrcp.pop %v289
  %v396 = vrcp.pop %v296
  %v397 = vrcp.pop %v303
  %v398 = vrcp.pop %v310
  %v399 = vrcp.pop %v317
  %v400 = vrcp.pop %v324
  %v401 = vrcp.pop %v331
  %v402 = vrcp.pop %v338
  %v403 = vrcp.pop %v345
  %v404 = vrcp.pop %v352
  %v405 = vrcp.pop %v359
  %v406 = vrcp.pop %v366
  %v407 = vrcp.pop %v373
  %v408 = vrcp.pop %v380
  %v409 = vrcp.pop %v387
  %v410 = vrcp.pop %v394
  %v427 = vcombine.low %v395, %v396
  %v428 = vcombine.low %v397, %v398
  %v429 = vcombine.low %v399, %v400
  %v430 = vcombine.low %v401, %v402
  %v431 = vcombine.low %v403, %v404
  %v432 = vcombine.low %v405, %v406
  %v433 = vcombine.low %v407, %v408
  %v434 = vcombine.low %v409, %v410
  %v443 = vmul.f32 %v244, %v427
  %v444 = vmul.f32 %v246, %v428
  %v445 = vmul.f32 %v248, %v429
  %v446 = vmul.f32 %v250, %v430
  %v447 = vmul.f32 %v252, %v431
  %v448 = vmul.f32 %v254, %v432
  %v449 = vmul.f32 %v256, %v433
  %v450 = vmul.f32 %v258, %v434
  %s451 = sadd.s32 0, 0
  %s452 = smul.u32 %s451, 256
  %v453 = vlaneseq
  %v454 = vand.u32 %v453, 127
  %v455 = vadd.s32 %v454, 128
  %v456 = vstv %s452
  %v457 = vadd.s32 %v456, %v454
  %v458 = vadd.s32 %v456, %v455
  %vm459 = vcmp.lt.s32.totalorder %v457, 256
  %vm460 = vcmp.lt.s32.totalorder %v458, 256
  %v461 = vsub.f32 %v443, %v444
  %v462 = vsub.f32 %v444, %v445
  %v463 = vsub.f32 %v445, %v446
  %v464 = vsub.f32 %v446, %v447
  %v465 = vsub.f32 %v447, %v448
  %v466 = vsub.f32 %v448, %v449
  %v467 = vsub.f32 %v449, %v450
  %v468 = vmul.f32 %v461, %v461
  %v469 = vmul.f32 %v462, %v462
  %v470 = vmul.f32 %v463, %v463
  %v471 = vmul.f32 %v464, %v464
  %v472 = vmul.f32 %v465, %v465
  %v473 = vmul.f32 %v466, %v466
  %v474 = vmul.f32 %v467, %v467
  %v482 = vcombine.high %v468, %v468
  %v483 = vcombine.high %v469, %v469
  %v484 = vcombine.high %v470, %v470
  %v485 = vcombine.high %v471, %v471
  %v486 = vcombine.high %v472, %v472
  %v487 = vcombine.high %v473, %v473
  %v488 = vcombine.high %v474, %v474
  %v496 = vsel %vm90, %v468, 0.0
  %v497 = vrot.slane %v496, 4
  %v498 = vadd.f32 %v496, %v497
  %v499 = vrot.slane %v498, 2
  %v500 = vadd.f32 %v498, %v499
  %v501 = vrot.slane %v500, 1
  %v502 = vadd.f32 %v500, %v501
  %v503 = vsel %vm90, %v482, 0.0
  %v504 = vrot.slane %v503, 4
  %v505 = vadd.f32 %v503, %v504
  %v506 = vrot.slane %v505, 2
  %v507 = vadd.f32 %v505, %v506
  %v508 = vrot.slane %v507, 1
  %v509 = vadd.f32 %v507, %v508
  %v510 = vsel %vm90, %v469, 0.0
  %v511 = vrot.slane %v510, 4
  %v512 = vadd.f32 %v510, %v511
  %v513 = vrot.slane %v512, 2
  %v514 = vadd.f32 %v512, %v513
  %v515 = vrot.slane %v514, 1
  %v516 = vadd.f32 %v514, %v515
  %v517 = vsel %vm90, %v483, 0.0
  %v518 = vrot.slane %v517, 4
  %v519 = vadd.f32 %v517, %v518
  %v520 = vrot.slane %v519, 2
  %v521 = vadd.f32 %v519, %v520
  %v522 = vrot.slane %v521, 1
  %v523 = vadd.f32 %v521, %v522
  %v524 = vsel %vm90, %v470, 0.0
  %v525 = vrot.slane %v524, 4
  %v526 = vadd.f32 %v524, %v525
  %v527 = vrot.slane %v526, 2
  %v528 = vadd.f32 %v526, %v527
  %v529 = vrot.slane %v528, 1
  %v530 = vadd.f32 %v528, %v529
  %v531 = vsel %vm90, %v484, 0.0
  %v532 = vrot.slane %v531, 4
  %v533 = vadd.f32 %v531, %v532
  %v534 = vrot.slane %v533, 2
  %v535 = vadd.f32 %v533, %v534
  %v536 = vrot.slane %v535, 1
  %v537 = vadd.f32 %v535, %v536
  %v538 = vsel %vm90, %v471, 0.0
  %v539 = vrot.slane %v538, 4
  %v540 = vadd.f32 %v538, %v539
  %v541 = vrot.slane %v540, 2
  %v542 = vadd.f32 %v540, %v541
  %v543 = vrot.slane %v542, 1
  %v544 = vadd.f32 %v542, %v543
  %v545 = vsel %vm90, %v485, 0.0
  %v546 = vrot.slane %v545, 4
  %v547 = vadd.f32 %v545, %v546
  %v548 = vrot.slane %v547, 2
  %v549 = vadd.f32 %v547, %v548
  %v550 = vrot.slane %v549, 1
  %v551 = vadd.f32 %v549, %v550
  %v552 = vsel %vm90, %v472, 0.0
  %v553 = vrot.slane %v552, 4
  %v554 = vadd.f32 %v552, %v553
  %v555 = vrot.slane %v554, 2
  %v556 = vadd.f32 %v554, %v555
  %v557 = vrot.slane %v556, 1
  %v558 = vadd.f32 %v556, %v557
  %v559 = vsel %vm90, %v486, 0.0
  %v560 = vrot.slane %v559, 4
  %v561 = vadd.f32 %v559, %v560
  %v562 = vrot.slane %v561, 2
  %v563 = vadd.f32 %v561, %v562
  %v564 = vrot.slane %v563, 1
  %v565 = vadd.f32 %v563, %v564
  %v566 = vsel %vm90, %v473, 0.0
  %v567 = vrot.slane %v566, 4
  %v568 = vadd.f32 %v566, %v567
  %v569 = vrot.slane %v568, 2
  %v570 = vadd.f32 %v568, %v569
  %v571 = vrot.slane %v570, 1
  %v572 = vadd.f32 %v570, %v571
  %v573 = vsel %vm90, %v487, 0.0
  %v574 = vrot.slane %v573, 4
  %v575 = vadd.f32 %v573, %v574
  %v576 = vrot.slane %v575, 2
  %v577 = vadd.f32 %v575, %v576
  %v578 = vrot.slane %v577, 1
  %v579 = vadd.f32 %v577, %v578
  %v580 = vsel %vm90, %v474, 0.0
  %v581 = vrot.slane %v580, 4
  %v582 = vadd.f32 %v580, %v581
  %v583 = vrot.slane %v582, 2
  %v584 = vadd.f32 %v582, %v583
  %v585 = vrot.slane %v584, 1
  %v586 = vadd.f32 %v584, %v585
  %v587 = vsel %vm90, %v488, 0.0
  %v588 = vrot.slane %v587, 4
  %v589 = vadd.f32 %v587, %v588
  %v590 = vrot.slane %v589, 2
  %v591 = vadd.f32 %v589, %v590
  %v592 = vrot.slane %v591, 1
  %v593 = vadd.f32 %v591, %v592
  %v594 = vrsqrt.pop %v502
  %v595 = vmul.f32 %v502, %v594
  %vm596 = vcmp.eq.f32.partialorder %v502, inf
  %v597 = vsel %vm596, %v502, %v595
  %vm598 = vcmp.eq.f32.partialorder %v502, 0.0
  %v599 = vand.u32 %v502, 2147483648
  %v600 = vsel %vm598, %v599, %v597
  %v601 = vrsqrt.pop %v509
  %v602 = vmul.f32 %v509, %v601
  %vm603 = vcmp.eq.f32.partialorder %v509, inf
  %v604 = vsel %vm603, %v509, %v602
  %vm605 = vcmp.eq.f32.partialorder %v509, 0.0
  %v606 = vand.u32 %v509, 2147483648
  %v607 = vsel %vm605, %v606, %v604
  %v608 = vrsqrt.pop %v516
  %v609 = vmul.f32 %v516, %v608
  %vm610 = vcmp.eq.f32.partialorder %v516, inf
  %v611 = vsel %vm610, %v516, %v609
  %vm612 = vcmp.eq.f32.partialorder %v516, 0.0
  %v613 = vand.u32 %v516, 2147483648
  %v614 = vsel %vm612, %v613, %v611
  %v615 = vrsqrt.pop %v523
  %v616 = vmul.f32 %v523, %v615
  %vm617 = vcmp.eq.f32.partialorder %v523, inf
  %v618 = vsel %vm617, %v523, %v616
  %vm619 = vcmp.eq.f32.partialorder %v523, 0.0
  %v620 = vand.u32 %v523, 2147483648
  %v621 = vsel %vm619, %v620, %v618
  %v622 = vrsqrt.pop %v530
  %v623 = vmul.f32 %v530, %v622
  %vm624 = vcmp.eq.f32.partialorder %v530, inf
  %v625 = vsel %vm624, %v530, %v623
  %vm626 = vcmp.eq.f32.partialorder %v530, 0.0
  %v627 = vand.u32 %v530, 2147483648
  %v628 = vsel %vm626, %v627, %v625
  %v629 = vrsqrt.pop %v537
  %v630 = vmul.f32 %v537, %v629
  %vm631 = vcmp.eq.f32.partialorder %v537, inf
  %v632 = vsel %vm631, %v537, %v630
  %vm633 = vcmp.eq.f32.partialorder %v537, 0.0
  %v634 = vand.u32 %v537, 2147483648
  %v635 = vsel %vm633, %v634, %v632
  %v636 = vrsqrt.pop %v544
  %v637 = vmul.f32 %v544, %v636
  %vm638 = vcmp.eq.f32.partialorder %v544, inf
  %v639 = vsel %vm638, %v544, %v637
  %vm640 = vcmp.eq.f32.partialorder %v544, 0.0
  %v641 = vand.u32 %v544, 2147483648
  %v642 = vsel %vm640, %v641, %v639
  %v643 = vrsqrt.pop %v551
  %v644 = vmul.f32 %v551, %v643
  %vm645 = vcmp.eq.f32.partialorder %v551, inf
  %v646 = vsel %vm645, %v551, %v644
  %vm647 = vcmp.eq.f32.partialorder %v551, 0.0
  %v648 = vand.u32 %v551, 2147483648
  %v649 = vsel %vm647, %v648, %v646
  %v650 = vrsqrt.pop %v558
  %v651 = vmul.f32 %v558, %v650
  %vm652 = vcmp.eq.f32.partialorder %v558, inf
  %v653 = vsel %vm652, %v558, %v651
  %vm654 = vcmp.eq.f32.partialorder %v558, 0.0
  %v655 = vand.u32 %v558, 2147483648
  %v656 = vsel %vm654, %v655, %v653
  %v657 = vrsqrt.pop %v565
  %v658 = vmul.f32 %v565, %v657
  %vm659 = vcmp.eq.f32.partialorder %v565, inf
  %v660 = vsel %vm659, %v565, %v658
  %vm661 = vcmp.eq.f32.partialorder %v565, 0.0
  %v662 = vand.u32 %v565, 2147483648
  %v663 = vsel %vm661, %v662, %v660
  %v664 = vrsqrt.pop %v572
  %v665 = vmul.f32 %v572, %v664
  %vm666 = vcmp.eq.f32.partialorder %v572, inf
  %v667 = vsel %vm666, %v572, %v665
  %vm668 = vcmp.eq.f32.partialorder %v572, 0.0
  %v669 = vand.u32 %v572, 2147483648
  %v670 = vsel %vm668, %v669, %v667
  %v671 = vrsqrt.pop %v579
  %v672 = vmul.f32 %v579, %v671
  %vm673 = vcmp.eq.f32.partialorder %v579, inf
  %v674 = vsel %vm673, %v579, %v672
  %vm675 = vcmp.eq.f32.partialorder %v579, 0.0
  %v676 = vand.u32 %v579, 2147483648
  %v677 = vsel %vm675, %v676, %v674
  %v678 = vrsqrt.pop %v586
  %v679 = vmul.f32 %v586, %v678
  %vm680 = vcmp.eq.f32.partialorder %v586, inf
  %v681 = vsel %vm680, %v586, %v679
  %vm682 = vcmp.eq.f32.partialorder %v586, 0.0
  %v683 = vand.u32 %v586, 2147483648
  %v684 = vsel %vm682, %v683, %v681
  %v685 = vrsqrt.pop %v593
  %v686 = vmul.f32 %v593, %v685
  %vm687 = vcmp.eq.f32.partialorder %v593, inf
  %v688 = vsel %vm687, %v593, %v686
  %vm689 = vcmp.eq.f32.partialorder %v593, 0.0
  %v690 = vand.u32 %v593, 2147483648
  %v691 = vsel %vm689, %v690, %v688
  %v692 = vsel %vm459, 1, 0
  %v693 = vsel %vm460, 1, 0
  %vm694 = vcmp.eq.s32.totalorder %v692, 1
  %vm695 = vcmp.eq.s32.totalorder %v693, 1
  %vm710 = vcmask 1041409
  %v711 = vsel %vm710, %v614, %v600
  %vm712 = vcmask 1042434
  %v713 = vsel %vm712, %v628, %v711
  %vm714 = vcmask 1043459
  %v715 = vsel %vm714, %v642, %v713
  %vm716 = vcmask 1044484
  %v717 = vsel %vm716, %v656, %v715
  %vm718 = vcmask 1045509
  %v719 = vsel %vm718, %v670, %v717
  %vm720 = vcmask 1046534
  %v721 = vsel %vm720, %v684, %v719
  %v722 = vsel %vm710, %v621, %v607
  %v723 = vsel %vm712, %v635, %v722
  %v724 = vsel %vm714, %v649, %v723
  %v725 = vsel %vm716, %v663, %v724
  %v726 = vsel %vm718, %v677, %v725
  %v727 = vsel %vm720, %v691, %v726
  %v730 = vsel %vm694, %v721, 0.0
  %v731 = vsel %vm695, %v727, 0.0
  %v732 = vld [vmem:[#allocation2] sm:$0x7f]
  %v733 = vld [vmem:[#allocation2 + $0x8] sm:$0x7f]
  %v734 = vadd.f32 %v732, %v730
  %v735 = vadd.f32 %v733, %v731
  %736 = vst [vmem:[#allocation2] sm:$0x7f] %v734
  %737 = vst [vmem:[#allocation2 + $0x8] sm:$0x7f] %v735
  %v738 = vsub.f32 %v443, %v445
  %v739 = vsub.f32 %v444, %v446
  %v740 = vsub.f32 %v445, %v447
  %v741 = vsub.f32 %v446, %v448
  %v742 = vsub.f32 %v447, %v449
  %v743 = vsub.f32 %v448, %v450
  %v744 = vmul.f32 %v738, %v738
  %v745 = vmul.f32 %v739, %v739
  %v746 = vmul.f32 %v740, %v740
  %v747 = vmul.f32 %v741, %v741
  %v748 = vmul.f32 %v742, %v742
  %v749 = vmul.f32 %v743, %v743
  %v756 = vcombine.high %v744, %v744
  %v757 = vcombine.high %v745, %v745
  %v758 = vcombine.high %v746, %v746
  %v759 = vcombine.high %v747, %v747
  %v760 = vcombine.high %v748, %v748
  %v761 = vcombine.high %v749, %v749
  %v768 = vsel %vm90, %v744, 0.0
  %v769 = vrot.slane %v768, 4
  %v770 = vadd.f32 %v768, %v769
  %v771 = vrot.slane %v770, 2
  %v772 = vadd.f32 %v770, %v771
  %v773 = vrot.slane %v772, 1
  %v774 = vadd.f32 %v772, %v773
  %v775 = vsel %vm90, %v756, 0.0
  %v776 = vrot.slane %v775, 4
  %v777 = vadd.f32 %v775, %v776
  %v778 = vrot.slane %v777, 2
  %v779 = vadd.f32 %v777, %v778
  %v780 = vrot.slane %v779, 1
  %v781 = vadd.f32 %v779, %v780
  %v782 = vsel %vm90, %v745, 0.0
  %v783 = vrot.slane %v782, 4
  %v784 = vadd.f32 %v782, %v783
  %v785 = vrot.slane %v784, 2
  %v786 = vadd.f32 %v784, %v785
  %v787 = vrot.slane %v786, 1
  %v788 = vadd.f32 %v786, %v787
  %v789 = vsel %vm90, %v757, 0.0
  %v790 = vrot.slane %v789, 4
  %v791 = vadd.f32 %v789, %v790
  %v792 = vrot.slane %v791, 2
  %v793 = vadd.f32 %v791, %v792
  %v794 = vrot.slane %v793, 1
  %v795 = vadd.f32 %v793, %v794
  %v796 = vsel %vm90, %v746, 0.0
  %v797 = vrot.slane %v796, 4
  %v798 = vadd.f32 %v796, %v797
  %v799 = vrot.slane %v798, 2
  %v800 = vadd.f32 %v798, %v799
  %v801 = vrot.slane %v800, 1
  %v802 = vadd.f32 %v800, %v801
  %v803 = vsel %vm90, %v758, 0.0
  %v804 = vrot.slane %v803, 4
  %v805 = vadd.f32 %v803, %v804
  %v806 = vrot.slane %v805, 2
  %v807 = vadd.f32 %v805, %v806
  %v808 = vrot.slane %v807, 1
  %v809 = vadd.f32 %v807, %v808
  %v810 = vsel %vm90, %v747, 0.0
  %v811 = vrot.slane %v810, 4
  %v812 = vadd.f32 %v810, %v811
  %v813 = vrot.slane %v812, 2
  %v814 = vadd.f32 %v812, %v813
  %v815 = vrot.slane %v814, 1
  %v816 = vadd.f32 %v814, %v815
  %v817 = vsel %vm90, %v759, 0.0
  %v818 = vrot.slane %v817, 4
  %v819 = vadd.f32 %v817, %v818
  %v820 = vrot.slane %v819, 2
  %v821 = vadd.f32 %v819, %v820
  %v822 = vrot.slane %v821, 1
  %v823 = vadd.f32 %v821, %v822
  %v824 = vsel %vm90, %v748, 0.0
  %v825 = vrot.slane %v824, 4
  %v826 = vadd.f32 %v824, %v825
  %v827 = vrot.slane %v826, 2
  %v828 = vadd.f32 %v826, %v827
  %v829 = vrot.slane %v828, 1
  %v830 = vadd.f32 %v828, %v829
  %v831 = vsel %vm90, %v760, 0.0
  %v832 = vrot.slane %v831, 4
  %v833 = vadd.f32 %v831, %v832
  %v834 = vrot.slane %v833, 2
  %v835 = vadd.f32 %v833, %v834
  %v836 = vrot.slane %v835, 1
  %v837 = vadd.f32 %v835, %v836
  %v838 = vsel %vm90, %v749, 0.0
  %v839 = vrot.slane %v838, 4
  %v840 = vadd.f32 %v838, %v839
  %v841 = vrot.slane %v840, 2
  %v842 = vadd.f32 %v840, %v841
  %v843 = vrot.slane %v842, 1
  %v844 = vadd.f32 %v842, %v843
  %v845 = vsel %vm90, %v761, 0.0
  %v846 = vrot.slane %v845, 4
  %v847 = vadd.f32 %v845, %v846
  %v848 = vrot.slane %v847, 2
  %v849 = vadd.f32 %v847, %v848
  %v850 = vrot.slane %v849, 1
  %v851 = vadd.f32 %v849, %v850
  %v852 = vrsqrt.pop %v774
  %v853 = vmul.f32 %v774, %v852
  %vm854 = vcmp.eq.f32.partialorder %v774, inf
  %v855 = vsel %vm854, %v774, %v853
  %vm856 = vcmp.eq.f32.partialorder %v774, 0.0
  %v857 = vand.u32 %v774, 2147483648
  %v858 = vsel %vm856, %v857, %v855
  %v859 = vrsqrt.pop %v781
  %v860 = vmul.f32 %v781, %v859
  %vm861 = vcmp.eq.f32.partialorder %v781, inf
  %v862 = vsel %vm861, %v781, %v860
  %vm863 = vcmp.eq.f32.partialorder %v781, 0.0
  %v864 = vand.u32 %v781, 2147483648
  %v865 = vsel %vm863, %v864, %v862
  %v866 = vrsqrt.pop %v788
  %v867 = vmul.f32 %v788, %v866
  %vm868 = vcmp.eq.f32.partialorder %v788, inf
  %v869 = vsel %vm868, %v788, %v867
  %vm870 = vcmp.eq.f32.partialorder %v788, 0.0
  %v871 = vand.u32 %v788, 2147483648
  %v872 = vsel %vm870, %v871, %v869
  %v873 = vrsqrt.pop %v795
  %v874 = vmul.f32 %v795, %v873
  %vm875 = vcmp.eq.f32.partialorder %v795, inf
  %v876 = vsel %vm875, %v795, %v874
  %vm877 = vcmp.eq.f32.partialorder %v795, 0.0
  %v878 = vand.u32 %v795, 2147483648
  %v879 = vsel %vm877, %v878, %v876
  %v880 = vrsqrt.pop %v802
  %v881 = vmul.f32 %v802, %v880
  %vm882 = vcmp.eq.f32.partialorder %v802, inf
  %v883 = vsel %vm882, %v802, %v881
  %vm884 = vcmp.eq.f32.partialorder %v802, 0.0
  %v885 = vand.u32 %v802, 2147483648
  %v886 = vsel %vm884, %v885, %v883
  %v887 = vrsqrt.pop %v809
  %v888 = vmul.f32 %v809, %v887
  %vm889 = vcmp.eq.f32.partialorder %v809, inf
  %v890 = vsel %vm889, %v809, %v888
  %vm891 = vcmp.eq.f32.partialorder %v809, 0.0
  %v892 = vand.u32 %v809, 2147483648
  %v893 = vsel %vm891, %v892, %v890
  %v894 = vrsqrt.pop %v816
  %v895 = vmul.f32 %v816, %v894
  %vm896 = vcmp.eq.f32.partialorder %v816, inf
  %v897 = vsel %vm896, %v816, %v895
  %vm898 = vcmp.eq.f32.partialorder %v816, 0.0
  %v899 = vand.u32 %v816, 2147483648
  %v900 = vsel %vm898, %v899, %v897
  %v901 = vrsqrt.pop %v823
  %v902 = vmul.f32 %v823, %v901
  %vm903 = vcmp.eq.f32.partialorder %v823, inf
  %v904 = vsel %vm903, %v823, %v902
  %vm905 = vcmp.eq.f32.partialorder %v823, 0.0
  %v906 = vand.u32 %v823, 2147483648
  %v907 = vsel %vm905, %v906, %v904
  %v908 = vrsqrt.pop %v830
  %v909 = vmul.f32 %v830, %v908
  %vm910 = vcmp.eq.f32.partialorder %v830, inf
  %v911 = vsel %vm910, %v830, %v909
  %vm912 = vcmp.eq.f32.partialorder %v830, 0.0
  %v913 = vand.u32 %v830, 2147483648
  %v914 = vsel %vm912, %v913, %v911
  %v915 = vrsqrt.pop %v837
  %v916 = vmul.f32 %v837, %v915
  %vm917 = vcmp.eq.f32.partialorder %v837, inf
  %v918 = vsel %vm917, %v837, %v916
  %vm919 = vcmp.eq.f32.partialorder %v837, 0.0
  %v920 = vand.u32 %v837, 2147483648
  %v921 = vsel %vm919, %v920, %v918
  %v922 = vrsqrt.pop %v844
  %v923 = vmul.f32 %v844, %v922
  %vm924 = vcmp.eq.f32.partialorder %v844, inf
  %v925 = vsel %vm924, %v844, %v923
  %vm926 = vcmp.eq.f32.partialorder %v844, 0.0
  %v927 = vand.u32 %v844, 2147483648
  %v928 = vsel %vm926, %v927, %v925
  %v929 = vrsqrt.pop %v851
  %v930 = vmul.f32 %v851, %v929
  %vm931 = vcmp.eq.f32.partialorder %v851, inf
  %v932 = vsel %vm931, %v851, %v930
  %vm933 = vcmp.eq.f32.partialorder %v851, 0.0
  %v934 = vand.u32 %v851, 2147483648
  %v935 = vsel %vm933, %v934, %v932
  %v948 = vsel %vm710, %v872, %v858
  %v949 = vsel %vm712, %v886, %v948
  %v950 = vsel %vm714, %v900, %v949
  %v951 = vsel %vm716, %v914, %v950
  %v952 = vsel %vm718, %v928, %v951
  %v953 = vsel %vm710, %v879, %v865
  %v954 = vsel %vm712, %v893, %v953
  %v955 = vsel %vm714, %v907, %v954
  %v956 = vsel %vm716, %v921, %v955
  %v957 = vsel %vm718, %v935, %v956
  %v960 = vsel %vm694, %v952, 0.0
  %v961 = vsel %vm695, %v957, 0.0
  %s962 = scalar_lea.vmem [#allocation2], 16
  %v963 = vld [vmem:[%s962] sm:$0x3f]
  %v964 = vld [vmem:[%s962 + $0x8] sm:$0x3f]
  %v965 = vadd.f32 %v963, %v960
  %v966 = vadd.f32 %v964, %v961
  %967 = vst [vmem:[%s962] sm:$0x3f] %v965
  %968 = vst [vmem:[%s962 + $0x8] sm:$0x3f] %v966
  %v969 = vsub.f32 %v443, %v446
  %v970 = vsub.f32 %v444, %v447
  %v971 = vsub.f32 %v445, %v448
  %v972 = vsub.f32 %v446, %v449
  %v973 = vsub.f32 %v447, %v450
  %v974 = vmul.f32 %v969, %v969
  %v975 = vmul.f32 %v970, %v970
  %v976 = vmul.f32 %v971, %v971
  %v977 = vmul.f32 %v972, %v972
  %v978 = vmul.f32 %v973, %v973
  %v984 = vcombine.high %v974, %v974
  %v985 = vcombine.high %v975, %v975
  %v986 = vcombine.high %v976, %v976
  %v987 = vcombine.high %v977, %v977
  %v988 = vcombine.high %v978, %v978
  %v994 = vsel %vm90, %v974, 0.0
  %v995 = vrot.slane %v994, 4
  %v996 = vadd.f32 %v994, %v995
  %v997 = vrot.slane %v996, 2
  %v998 = vadd.f32 %v996, %v997
  %v999 = vrot.slane %v998, 1
  %v1000 = vadd.f32 %v998, %v999
  %v1001 = vsel %vm90, %v984, 0.0
  %v1002 = vrot.slane %v1001, 4
  %v1003 = vadd.f32 %v1001, %v1002
  %v1004 = vrot.slane %v1003, 2
  %v1005 = vadd.f32 %v1003, %v1004
  %v1006 = vrot.slane %v1005, 1
  %v1007 = vadd.f32 %v1005, %v1006
  %v1008 = vsel %vm90, %v975, 0.0
  %v1009 = vrot.slane %v1008, 4
  %v1010 = vadd.f32 %v1008, %v1009
  %v1011 = vrot.slane %v1010, 2
  %v1012 = vadd.f32 %v1010, %v1011
  %v1013 = vrot.slane %v1012, 1
  %v1014 = vadd.f32 %v1012, %v1013
  %v1015 = vsel %vm90, %v985, 0.0
  %v1016 = vrot.slane %v1015, 4
  %v1017 = vadd.f32 %v1015, %v1016
  %v1018 = vrot.slane %v1017, 2
  %v1019 = vadd.f32 %v1017, %v1018
  %v1020 = vrot.slane %v1019, 1
  %v1021 = vadd.f32 %v1019, %v1020
  %v1022 = vsel %vm90, %v976, 0.0
  %v1023 = vrot.slane %v1022, 4
  %v1024 = vadd.f32 %v1022, %v1023
  %v1025 = vrot.slane %v1024, 2
  %v1026 = vadd.f32 %v1024, %v1025
  %v1027 = vrot.slane %v1026, 1
  %v1028 = vadd.f32 %v1026, %v1027
  %v1029 = vsel %vm90, %v986, 0.0
  %v1030 = vrot.slane %v1029, 4
  %v1031 = vadd.f32 %v1029, %v1030
  %v1032 = vrot.slane %v1031, 2
  %v1033 = vadd.f32 %v1031, %v1032
  %v1034 = vrot.slane %v1033, 1
  %v1035 = vadd.f32 %v1033, %v1034
  %v1036 = vsel %vm90, %v977, 0.0
  %v1037 = vrot.slane %v1036, 4
  %v1038 = vadd.f32 %v1036, %v1037
  %v1039 = vrot.slane %v1038, 2
  %v1040 = vadd.f32 %v1038, %v1039
  %v1041 = vrot.slane %v1040, 1
  %v1042 = vadd.f32 %v1040, %v1041
  %v1043 = vsel %vm90, %v987, 0.0
  %v1044 = vrot.slane %v1043, 4
  %v1045 = vadd.f32 %v1043, %v1044
  %v1046 = vrot.slane %v1045, 2
  %v1047 = vadd.f32 %v1045, %v1046
  %v1048 = vrot.slane %v1047, 1
  %v1049 = vadd.f32 %v1047, %v1048
  %v1050 = vsel %vm90, %v978, 0.0
  %v1051 = vrot.slane %v1050, 4
  %v1052 = vadd.f32 %v1050, %v1051
  %v1053 = vrot.slane %v1052, 2
  %v1054 = vadd.f32 %v1052, %v1053
  %v1055 = vrot.slane %v1054, 1
  %v1056 = vadd.f32 %v1054, %v1055
  %v1057 = vsel %vm90, %v988, 0.0
  %v1058 = vrot.slane %v1057, 4
  %v1059 = vadd.f32 %v1057, %v1058
  %v1060 = vrot.slane %v1059, 2
  %v1061 = vadd.f32 %v1059, %v1060
  %v1062 = vrot.slane %v1061, 1
  %v1063 = vadd.f32 %v1061, %v1062
  %v1064 = vrsqrt.pop %v1000
  %v1065 = vmul.f32 %v1000, %v1064
  %vm1066 = vcmp.eq.f32.partialorder %v1000, inf
  %v1067 = vsel %vm1066, %v1000, %v1065
  %vm1068 = vcmp.eq.f32.partialorder %v1000, 0.0
  %v1069 = vand.u32 %v1000, 2147483648
  %v1070 = vsel %vm1068, %v1069, %v1067
  %v1071 = vrsqrt.pop %v1007
  %v1072 = vmul.f32 %v1007, %v1071
  %vm1073 = vcmp.eq.f32.partialorder %v1007, inf
  %v1074 = vsel %vm1073, %v1007, %v1072
  %vm1075 = vcmp.eq.f32.partialorder %v1007, 0.0
  %v1076 = vand.u32 %v1007, 2147483648
  %v1077 = vsel %vm1075, %v1076, %v1074
  %v1078 = vrsqrt.pop %v1014
  %v1079 = vmul.f32 %v1014, %v1078
  %vm1080 = vcmp.eq.f32.partialorder %v1014, inf
  %v1081 = vsel %vm1080, %v1014, %v1079
  %vm1082 = vcmp.eq.f32.partialorder %v1014, 0.0
  %v1083 = vand.u32 %v1014, 2147483648
  %v1084 = vsel %vm1082, %v1083, %v1081
  %v1085 = vrsqrt.pop %v1021
  %v1086 = vmul.f32 %v1021, %v1085
  %vm1087 = vcmp.eq.f32.partialorder %v1021, inf
  %v1088 = vsel %vm1087, %v1021, %v1086
  %vm1089 = vcmp.eq.f32.partialorder %v1021, 0.0
  %v1090 = vand.u32 %v1021, 2147483648
  %v1091 = vsel %vm1089, %v1090, %v1088
  %v1092 = vrsqrt.pop %v1028
  %v1093 = vmul.f32 %v1028, %v1092
  %vm1094 = vcmp.eq.f32.partialorder %v1028, inf
  %v1095 = vsel %vm1094, %v1028, %v1093
  %vm1096 = vcmp.eq.f32.partialorder %v1028, 0.0
  %v1097 = vand.u32 %v1028, 2147483648
  %v1098 = vsel %vm1096, %v1097, %v1095
  %v1099 = vrsqrt.pop %v1035
  %v1100 = vmul.f32 %v1035, %v1099
  %vm1101 = vcmp.eq.f32.partialorder %v1035, inf
  %v1102 = vsel %vm1101, %v1035, %v1100
  %vm1103 = vcmp.eq.f32.partialorder %v1035, 0.0
  %v1104 = vand.u32 %v1035, 2147483648
  %v1105 = vsel %vm1103, %v1104, %v1102
  %v1106 = vrsqrt.pop %v1042
  %v1107 = vmul.f32 %v1042, %v1106
  %vm1108 = vcmp.eq.f32.partialorder %v1042, inf
  %v1109 = vsel %vm1108, %v1042, %v1107
  %vm1110 = vcmp.eq.f32.partialorder %v1042, 0.0
  %v1111 = vand.u32 %v1042, 2147483648
  %v1112 = vsel %vm1110, %v1111, %v1109
  %v1113 = vrsqrt.pop %v1049
  %v1114 = vmul.f32 %v1049, %v1113
  %vm1115 = vcmp.eq.f32.partialorder %v1049, inf
  %v1116 = vsel %vm1115, %v1049, %v1114
  %vm1117 = vcmp.eq.f32.partialorder %v1049, 0.0
  %v1118 = vand.u32 %v1049, 2147483648
  %v1119 = vsel %vm1117, %v1118, %v1116
  %v1120 = vrsqrt.pop %v1056
  %v1121 = vmul.f32 %v1056, %v1120
  %vm1122 = vcmp.eq.f32.partialorder %v1056, inf
  %v1123 = vsel %vm1122, %v1056, %v1121
  %vm1124 = vcmp.eq.f32.partialorder %v1056, 0.0
  %v1125 = vand.u32 %v1056, 2147483648
  %v1126 = vsel %vm1124, %v1125, %v1123
  %v1127 = vrsqrt.pop %v1063
  %v1128 = vmul.f32 %v1063, %v1127
  %vm1129 = vcmp.eq.f32.partialorder %v1063, inf
  %v1130 = vsel %vm1129, %v1063, %v1128
  %vm1131 = vcmp.eq.f32.partialorder %v1063, 0.0
  %v1132 = vand.u32 %v1063, 2147483648
  %v1133 = vsel %vm1131, %v1132, %v1130
  %v1144 = vsel %vm710, %v1084, %v1070
  %v1145 = vsel %vm712, %v1098, %v1144
  %v1146 = vsel %vm714, %v1112, %v1145
  %v1147 = vsel %vm716, %v1126, %v1146
  %v1148 = vsel %vm710, %v1091, %v1077
  %v1149 = vsel %vm712, %v1105, %v1148
  %v1150 = vsel %vm714, %v1119, %v1149
  %v1151 = vsel %vm716, %v1133, %v1150
  %v1154 = vsel %vm694, %v1147, 0.0
  %v1155 = vsel %vm695, %v1151, 0.0
  %s1156 = scalar_lea.vmem [#allocation2], 32
  %v1157 = vld [vmem:[%s1156] sm:$0x1f]
  %v1158 = vld [vmem:[%s1156 + $0x8] sm:$0x1f]
  %v1159 = vadd.f32 %v1157, %v1154
  %v1160 = vadd.f32 %v1158, %v1155
  %1161 = vst [vmem:[%s1156] sm:$0x1f] %v1159
  %1162 = vst [vmem:[%s1156 + $0x8] sm:$0x1f] %v1160
  %v1163 = vsub.f32 %v443, %v447
  %v1164 = vsub.f32 %v444, %v448
  %v1165 = vsub.f32 %v445, %v449
  %v1166 = vsub.f32 %v446, %v450
  %v1167 = vmul.f32 %v1163, %v1163
  %v1168 = vmul.f32 %v1164, %v1164
  %v1169 = vmul.f32 %v1165, %v1165
  %v1170 = vmul.f32 %v1166, %v1166
  %v1175 = vcombine.high %v1167, %v1167
  %v1176 = vcombine.high %v1168, %v1168
  %v1177 = vcombine.high %v1169, %v1169
  %v1178 = vcombine.high %v1170, %v1170
  %v1183 = vsel %vm90, %v1167, 0.0
  %v1184 = vrot.slane %v1183, 4
  %v1185 = vadd.f32 %v1183, %v1184
  %v1186 = vrot.slane %v1185, 2
  %v1187 = vadd.f32 %v1185, %v1186
  %v1188 = vrot.slane %v1187, 1
  %v1189 = vadd.f32 %v1187, %v1188
  %v1190 = vsel %vm90, %v1175, 0.0
  %v1191 = vrot.slane %v1190, 4
  %v1192 = vadd.f32 %v1190, %v1191
  %v1193 = vrot.slane %v1192, 2
  %v1194 = vadd.f32 %v1192, %v1193
  %v1195 = vrot.slane %v1194, 1
  %v1196 = vadd.f32 %v1194, %v1195
  %v1197 = vsel %vm90, %v1168, 0.0
  %v1198 = vrot.slane %v1197, 4
  %v1199 = vadd.f32 %v1197, %v1198
  %v1200 = vrot.slane %v1199, 2
  %v1201 = vadd.f32 %v1199, %v1200
  %v1202 = vrot.slane %v1201, 1
  %v1203 = vadd.f32 %v1201, %v1202
  %v1204 = vsel %vm90, %v1176, 0.0
  %v1205 = vrot.slane %v1204, 4
  %v1206 = vadd.f32 %v1204, %v1205
  %v1207 = vrot.slane %v1206, 2
  %v1208 = vadd.f32 %v1206, %v1207
  %v1209 = vrot.slane %v1208, 1
  %v1210 = vadd.f32 %v1208, %v1209
  %v1211 = vsel %vm90, %v1169, 0.0
  %v1212 = vrot.slane %v1211, 4
  %v1213 = vadd.f32 %v1211, %v1212
  %v1214 = vrot.slane %v1213, 2
  %v1215 = vadd.f32 %v1213, %v1214
  %v1216 = vrot.slane %v1215, 1
  %v1217 = vadd.f32 %v1215, %v1216
  %v1218 = vsel %vm90, %v1177, 0.0
  %v1219 = vrot.slane %v1218, 4
  %v1220 = vadd.f32 %v1218, %v1219
  %v1221 = vrot.slane %v1220, 2
  %v1222 = vadd.f32 %v1220, %v1221
  %v1223 = vrot.slane %v1222, 1
  %v1224 = vadd.f32 %v1222, %v1223
  %v1225 = vsel %vm90, %v1170, 0.0
  %v1226 = vrot.slane %v1225, 4
  %v1227 = vadd.f32 %v1225, %v1226
  %v1228 = vrot.slane %v1227, 2
  %v1229 = vadd.f32 %v1227, %v1228
  %v1230 = vrot.slane %v1229, 1
  %v1231 = vadd.f32 %v1229, %v1230
  %v1232 = vsel %vm90, %v1178, 0.0
  %v1233 = vrot.slane %v1232, 4
  %v1234 = vadd.f32 %v1232, %v1233
  %v1235 = vrot.slane %v1234, 2
  %v1236 = vadd.f32 %v1234, %v1235
  %v1237 = vrot.slane %v1236, 1
  %v1238 = vadd.f32 %v1236, %v1237
  %v1239 = vrsqrt.pop %v1189
  %v1240 = vmul.f32 %v1189, %v1239
  %vm1241 = vcmp.eq.f32.partialorder %v1189, inf
  %v1242 = vsel %vm1241, %v1189, %v1240
  %vm1243 = vcmp.eq.f32.partialorder %v1189, 0.0
  %v1244 = vand.u32 %v1189, 2147483648
  %v1245 = vsel %vm1243, %v1244, %v1242
  %v1246 = vrsqrt.pop %v1196
  %v1247 = vmul.f32 %v1196, %v1246
  %vm1248 = vcmp.eq.f32.partialorder %v1196, inf
  %v1249 = vsel %vm1248, %v1196, %v1247
  %vm1250 = vcmp.eq.f32.partialorder %v1196, 0.0
  %v1251 = vand.u32 %v1196, 2147483648
  %v1252 = vsel %vm1250, %v1251, %v1249
  %v1253 = vrsqrt.pop %v1203
  %v1254 = vmul.f32 %v1203, %v1253
  %vm1255 = vcmp.eq.f32.partialorder %v1203, inf
  %v1256 = vsel %vm1255, %v1203, %v1254
  %vm1257 = vcmp.eq.f32.partialorder %v1203, 0.0
  %v1258 = vand.u32 %v1203, 2147483648
  %v1259 = vsel %vm1257, %v1258, %v1256
  %v1260 = vrsqrt.pop %v1210
  %v1261 = vmul.f32 %v1210, %v1260
  %vm1262 = vcmp.eq.f32.partialorder %v1210, inf
  %v1263 = vsel %vm1262, %v1210, %v1261
  %vm1264 = vcmp.eq.f32.partialorder %v1210, 0.0
  %v1265 = vand.u32 %v1210, 2147483648
  %v1266 = vsel %vm1264, %v1265, %v1263
  %v1267 = vrsqrt.pop %v1217
  %v1268 = vmul.f32 %v1217, %v1267
  %vm1269 = vcmp.eq.f32.partialorder %v1217, inf
  %v1270 = vsel %vm1269, %v1217, %v1268
  %vm1271 = vcmp.eq.f32.partialorder %v1217, 0.0
  %v1272 = vand.u32 %v1217, 2147483648
  %v1273 = vsel %vm1271, %v1272, %v1270
  %v1274 = vrsqrt.pop %v1224
  %v1275 = vmul.f32 %v1224, %v1274
  %vm1276 = vcmp.eq.f32.partialorder %v1224, inf
  %v1277 = vsel %vm1276, %v1224, %v1275
  %vm1278 = vcmp.eq.f32.partialorder %v1224, 0.0
  %v1279 = vand.u32 %v1224, 2147483648
  %v1280 = vsel %vm1278, %v1279, %v1277
  %v1281 = vrsqrt.pop %v1231
  %v1282 = vmul.f32 %v1231, %v1281
  %vm1283 = vcmp.eq.f32.partialorder %v1231, inf
  %v1284 = vsel %vm1283, %v1231, %v1282
  %vm1285 = vcmp.eq.f32.partialorder %v1231, 0.0
  %v1286 = vand.u32 %v1231, 2147483648
  %v1287 = vsel %vm1285, %v1286, %v1284
  %v1288 = vrsqrt.pop %v1238
  %v1289 = vmul.f32 %v1238, %v1288
  %vm1290 = vcmp.eq.f32.partialorder %v1238, inf
  %v1291 = vsel %vm1290, %v1238, %v1289
  %vm1292 = vcmp.eq.f32.partialorder %v1238, 0.0
  %v1293 = vand.u32 %v1238, 2147483648
  %v1294 = vsel %vm1292, %v1293, %v1291
  %v1303 = vsel %vm710, %v1259, %v1245
  %v1304 = vsel %vm712, %v1273, %v1303
  %v1305 = vsel %vm714, %v1287, %v1304
  %v1306 = vsel %vm710, %v1266, %v1252
  %v1307 = vsel %vm712, %v1280, %v1306
  %v1308 = vsel %vm714, %v1294, %v1307
  %v1311 = vsel %vm694, %v1305, 0.0
  %v1312 = vsel %vm695, %v1308, 0.0
  %s1313 = scalar_lea.vmem [#allocation2], 48
  %v1314 = vld [vmem:[%s1313] sm:$0xf]
  %v1315 = vld [vmem:[%s1313 + $0x8] sm:$0xf]
  %v1316 = vadd.f32 %v1314, %v1311
  %v1317 = vadd.f32 %v1315, %v1312
  %1318 = vst [vmem:[%s1313] sm:$0xf] %v1316
  %1319 = vst [vmem:[%s1313 + $0x8] sm:$0xf] %v1317
  %v1320 = vsub.f32 %v443, %v448
  %v1321 = vsub.f32 %v444, %v449
  %v1322 = vsub.f32 %v445, %v450
  %v1323 = vmul.f32 %v1320, %v1320
  %v1324 = vmul.f32 %v1321, %v1321
  %v1325 = vmul.f32 %v1322, %v1322
  %v1329 = vcombine.high %v1323, %v1323
  %v1330 = vcombine.high %v1324, %v1324
  %v1331 = vcombine.high %v1325, %v1325
  %v1335 = vsel %vm90, %v1323, 0.0
  %v1336 = vrot.slane %v1335, 4
  %v1337 = vadd.f32 %v1335, %v1336
  %v1338 = vrot.slane %v1337, 2
  %v1339 = vadd.f32 %v1337, %v1338
  %v1340 = vrot.slane %v1339, 1
  %v1341 = vadd.f32 %v1339, %v1340
  %v1342 = vsel %vm90, %v1329, 0.0
  %v1343 = vrot.slane %v1342, 4
  %v1344 = vadd.f32 %v1342, %v1343
  %v1345 = vrot.slane %v1344, 2
  %v1346 = vadd.f32 %v1344, %v1345
  %v1347 = vrot.slane %v1346, 1
  %v1348 = vadd.f32 %v1346, %v1347
  %v1349 = vsel %vm90, %v1324, 0.0
  %v1350 = vrot.slane %v1349, 4
  %v1351 = vadd.f32 %v1349, %v1350
  %v1352 = vrot.slane %v1351, 2
  %v1353 = vadd.f32 %v1351, %v1352
  %v1354 = vrot.slane %v1353, 1
  %v1355 = vadd.f32 %v1353, %v1354
  %v1356 = vsel %vm90, %v1330, 0.0
  %v1357 = vrot.slane %v1356, 4
  %v1358 = vadd.f32 %v1356, %v1357
  %v1359 = vrot.slane %v1358, 2
  %v1360 = vadd.f32 %v1358, %v1359
  %v1361 = vrot.slane %v1360, 1
  %v1362 = vadd.f32 %v1360, %v1361
  %v1363 = vsel %vm90, %v1325, 0.0
  %v1364 = vrot.slane %v1363, 4
  %v1365 = vadd.f32 %v1363, %v1364
  %v1366 = vrot.slane %v1365, 2
  %v1367 = vadd.f32 %v1365, %v1366
  %v1368 = vrot.slane %v1367, 1
  %v1369 = vadd.f32 %v1367, %v1368
  %v1370 = vsel %vm90, %v1331, 0.0
  %v1371 = vrot.slane %v1370, 4
  %v1372 = vadd.f32 %v1370, %v1371
  %v1373 = vrot.slane %v1372, 2
  %v1374 = vadd.f32 %v1372, %v1373
  %v1375 = vrot.slane %v1374, 1
  %v1376 = vadd.f32 %v1374, %v1375
  %v1377 = vrsqrt.pop %v1341
  %v1378 = vmul.f32 %v1341, %v1377
  %vm1379 = vcmp.eq.f32.partialorder %v1341, inf
  %v1380 = vsel %vm1379, %v1341, %v1378
  %vm1381 = vcmp.eq.f32.partialorder %v1341, 0.0
  %v1382 = vand.u32 %v1341, 2147483648
  %v1383 = vsel %vm1381, %v1382, %v1380
  %v1384 = vrsqrt.pop %v1348
  %v1385 = vmul.f32 %v1348, %v1384
  %vm1386 = vcmp.eq.f32.partialorder %v1348, inf
  %v1387 = vsel %vm1386, %v1348, %v1385
  %vm1388 = vcmp.eq.f32.partialorder %v1348, 0.0
  %v1389 = vand.u32 %v1348, 2147483648
  %v1390 = vsel %vm1388, %v1389, %v1387
  %v1391 = vrsqrt.pop %v1355
  %v1392 = vmul.f32 %v1355, %v1391
  %vm1393 = vcmp.eq.f32.partialorder %v1355, inf
  %v1394 = vsel %vm1393, %v1355, %v1392
  %vm1395 = vcmp.eq.f32.partialorder %v1355, 0.0
  %v1396 = vand.u32 %v1355, 2147483648
  %v1397 = vsel %vm1395, %v1396, %v1394
  %v1398 = vrsqrt.pop %v1362
  %v1399 = vmul.f32 %v1362, %v1398
  %vm1400 = vcmp.eq.f32.partialorder %v1362, inf
  %v1401 = vsel %vm1400, %v1362, %v1399
  %vm1402 = vcmp.eq.f32.partialorder %v1362, 0.0
  %v1403 = vand.u32 %v1362, 2147483648
  %v1404 = vsel %vm1402, %v1403, %v1401
  %v1405 = vrsqrt.pop %v1369
  %v1406 = vmul.f32 %v1369, %v1405
  %vm1407 = vcmp.eq.f32.partialorder %v1369, inf
  %v1408 = vsel %vm1407, %v1369, %v1406
  %vm1409 = vcmp.eq.f32.partialorder %v1369, 0.0
  %v1410 = vand.u32 %v1369, 2147483648
  %v1411 = vsel %vm1409, %v1410, %v1408
  %v1412 = vrsqrt.pop %v1376
  %v1413 = vmul.f32 %v1376, %v1412
  %vm1414 = vcmp.eq.f32.partialorder %v1376, inf
  %v1415 = vsel %vm1414, %v1376, %v1413
  %vm1416 = vcmp.eq.f32.partialorder %v1376, 0.0
  %v1417 = vand.u32 %v1376, 2147483648
  %v1418 = vsel %vm1416, %v1417, %v1415
  %v1425 = vsel %vm710, %v1397, %v1383
  %v1426 = vsel %vm712, %v1411, %v1425
  %v1427 = vsel %vm710, %v1404, %v1390
  %v1428 = vsel %vm712, %v1418, %v1427
  %v1431 = vsel %vm694, %v1426, 0.0
  %v1432 = vsel %vm695, %v1428, 0.0
  %s1433 = scalar_lea.vmem [#allocation2], 64
  %v1434 = vld [vmem:[%s1433] sm:$0x7]
  %v1435 = vld [vmem:[%s1433 + $0x8] sm:$0x7]
  %v1436 = vadd.f32 %v1434, %v1431
  %v1437 = vadd.f32 %v1435, %v1432
  %1438 = vst [vmem:[%s1433] sm:$0x7] %v1436
  %1439 = vst [vmem:[%s1433 + $0x8] sm:$0x7] %v1437
  %v1440 = vsub.f32 %v443, %v449
  %v1441 = vsub.f32 %v444, %v450
  %v1442 = vmul.f32 %v1440, %v1440
  %v1443 = vmul.f32 %v1441, %v1441
  %v1446 = vcombine.high %v1442, %v1442
  %v1447 = vcombine.high %v1443, %v1443
  %v1450 = vsel %vm90, %v1442, 0.0
  %v1451 = vrot.slane %v1450, 4
  %v1452 = vadd.f32 %v1450, %v1451
  %v1453 = vrot.slane %v1452, 2
  %v1454 = vadd.f32 %v1452, %v1453
  %v1455 = vrot.slane %v1454, 1
  %v1456 = vadd.f32 %v1454, %v1455
  %v1457 = vsel %vm90, %v1446, 0.0
  %v1458 = vrot.slane %v1457, 4
  %v1459 = vadd.f32 %v1457, %v1458
  %v1460 = vrot.slane %v1459, 2
  %v1461 = vadd.f32 %v1459, %v1460
  %v1462 = vrot.slane %v1461, 1
  %v1463 = vadd.f32 %v1461, %v1462
  %v1464 = vsel %vm90, %v1443, 0.0
  %v1465 = vrot.slane %v1464, 4
  %v1466 = vadd.f32 %v1464, %v1465
  %v1467 = vrot.slane %v1466, 2
  %v1468 = vadd.f32 %v1466, %v1467
  %v1469 = vrot.slane %v1468, 1
  %v1470 = vadd.f32 %v1468, %v1469
  %v1471 = vsel %vm90, %v1447, 0.0
  %v1472 = vrot.slane %v1471, 4
  %v1473 = vadd.f32 %v1471, %v1472
  %v1474 = vrot.slane %v1473, 2
  %v1475 = vadd.f32 %v1473, %v1474
  %v1476 = vrot.slane %v1475, 1
  %v1477 = vadd.f32 %v1475, %v1476
  %v1478 = vrsqrt.pop %v1456
  %v1479 = vmul.f32 %v1456, %v1478
  %vm1480 = vcmp.eq.f32.partialorder %v1456, inf
  %v1481 = vsel %vm1480, %v1456, %v1479
  %vm1482 = vcmp.eq.f32.partialorder %v1456, 0.0
  %v1483 = vand.u32 %v1456, 2147483648
  %v1484 = vsel %vm1482, %v1483, %v1481
  %v1485 = vrsqrt.pop %v1463
  %v1486 = vmul.f32 %v1463, %v1485
  %vm1487 = vcmp.eq.f32.partialorder %v1463, inf
  %v1488 = vsel %vm1487, %v1463, %v1486
  %vm1489 = vcmp.eq.f32.partialorder %v1463, 0.0
  %v1490 = vand.u32 %v1463, 2147483648
  %v1491 = vsel %vm1489, %v1490, %v1488
  %v1492 = vrsqrt.pop %v1470
  %v1493 = vmul.f32 %v1470, %v1492
  %vm1494 = vcmp.eq.f32.partialorder %v1470, inf
  %v1495 = vsel %vm1494, %v1470, %v1493
  %vm1496 = vcmp.eq.f32.partialorder %v1470, 0.0
  %v1497 = vand.u32 %v1470, 2147483648
  %v1498 = vsel %vm1496, %v1497, %v1495
  %v1499 = vrsqrt.pop %v1477
  %v1500 = vmul.f32 %v1477, %v1499
  %vm1501 = vcmp.eq.f32.partialorder %v1477, inf
  %v1502 = vsel %vm1501, %v1477, %v1500
  %vm1503 = vcmp.eq.f32.partialorder %v1477, 0.0
  %v1504 = vand.u32 %v1477, 2147483648
  %v1505 = vsel %vm1503, %v1504, %v1502
  %v1510 = vsel %vm710, %v1498, %v1484
  %v1511 = vsel %vm710, %v1505, %v1491
  %v1514 = vsel %vm694, %v1510, 0.0
  %v1515 = vsel %vm695, %v1511, 0.0
  %s1516 = scalar_lea.vmem [#allocation2], 80
  %v1517 = vld [vmem:[%s1516] sm:$0x3]
  %v1518 = vld [vmem:[%s1516 + $0x8] sm:$0x3]
  %v1519 = vadd.f32 %v1517, %v1514
  %v1520 = vadd.f32 %v1518, %v1515
  %1521 = vst [vmem:[%s1516] sm:$0x3] %v1519
  %1522 = vst [vmem:[%s1516 + $0x8] sm:$0x3] %v1520
  %v1523 = vsub.f32 %v443, %v450
  %v1524 = vmul.f32 %v1523, %v1523
  %v1526 = vcombine.high %v1524, %v1524
  %v1528 = vsel %vm90, %v1524, 0.0
  %v1529 = vrot.slane %v1528, 4
  %v1530 = vadd.f32 %v1528, %v1529
  %v1531 = vrot.slane %v1530, 2
  %v1532 = vadd.f32 %v1530, %v1531
  %v1533 = vrot.slane %v1532, 1
  %v1534 = vadd.f32 %v1532, %v1533
  %v1535 = vsel %vm90, %v1526, 0.0
  %v1536 = vrot.slane %v1535, 4
  %v1537 = vadd.f32 %v1535, %v1536
  %v1538 = vrot.slane %v1537, 2
  %v1539 = vadd.f32 %v1537, %v1538
  %v1540 = vrot.slane %v1539, 1
  %v1541 = vadd.f32 %v1539, %v1540
  %v1542 = vrsqrt.pop %v1534
  %v1543 = vmul.f32 %v1534, %v1542
  %vm1544 = vcmp.eq.f32.partialorder %v1534, inf
  %v1545 = vsel %vm1544, %v1534, %v1543
  %vm1546 = vcmp.eq.f32.partialorder %v1534, 0.0
  %v1547 = vand.u32 %v1534, 2147483648
  %v1548 = vsel %vm1546, %v1547, %v1545
  %v1549 = vrsqrt.pop %v1541
  %v1550 = vmul.f32 %v1541, %v1549
  %vm1551 = vcmp.eq.f32.partialorder %v1541, inf
  %v1552 = vsel %vm1551, %v1541, %v1550
  %vm1553 = vcmp.eq.f32.partialorder %v1541, 0.0
  %v1554 = vand.u32 %v1541, 2147483648
  %v1555 = vsel %vm1553, %v1554, %v1552
  %v1556 = vsel %vm459, %v1548, 0.0
  %v1557 = vsel %vm460, %v1555, 0.0
  %s1558 = scalar_lea.vmem [#allocation2], 96
  %v1559 = vld [vmem:[%s1558] ss:$8 sm:$0x3]
  %v1562 = vcombine.low %v1556, %v1557
  %v1564 = vunpack.c.l.s4 1966171168
  %v1565 = vunpack.c.0.s8 %v1564
  %v1566 = vlaneseq
  %v1567 = vshrl.u32 %v1566, 7
  %v1568 = vsub.s32 %v1565, %v1567
  %v1569 = vrot.slane %v1562, %v1568
  %v1571 = vunpack.c.l.s4 1966171168
  %v1572 = vunpack.c.0.s8 %v1571
  %v1573 = vlaneseq
  %v1574 = vshrl.u32 %v1573, 7
  %v1575 = vsub.s32 %v1572, %v1574
  %v1576 = vrot.slane %v1569, %v1575
  %v1578 = vadd.f32 %v1559, %v1576
  %v1579 = vlaneseq
  %vm1580 = vcmp.ge.s32.totalorder %v1579, 0
  %vm1581 = vcmp.lt.s32.totalorder %v1579, 256
  %vm1582 = vmand %vm1580, %vm1581
  %1583 = vst.msk [vmem:[%s1558] ss:$8 sm:$0x3] %vm1582, %v1578
  %1584 = vst.msk [vmem:[%s1558] ss:$8 sm:$0x0] %vm1582, %v1578
  // Predicated region
  $region10: #{nt_xent_loss.1} parent=0 // pred_check
    %p1585 = pneg %p40
  $region11: #{nt_xent_loss.1} parent=0 // pred_check_branch
    %1587 = sbr.rel (%p1585) target = $region13
  $region12: #{nt_xent_loss.1} parent=0 // pred_region
    %v1588 = vld [vmem:[#allocation2] sm:$0xff]
    %v1589 = vld [vmem:[#allocation2 + $0x8] sm:$0xff]
    %v1590 = vld [vmem:[#allocation2 + $0x10] sm:$0xff]
    %v1591 = vld [vmem:[#allocation2 + $0x18] sm:$0xff]
    %v1592 = vld [vmem:[#allocation2 + $0x20] sm:$0xff]
    %v1593 = vld [vmem:[#allocation2 + $0x28] sm:$0xff]
    %v1594 = vld [vmem:[#allocation2 + $0x30] sm:$0xff]
    %v1595 = vld [vmem:[#allocation2 + $0x38] sm:$0xff]
    %v1596 = vld [vmem:[#allocation2 + $0x40] sm:$0xff]
    %v1597 = vld [vmem:[#allocation2 + $0x48] sm:$0xff]
    %v1598 = vld [vmem:[#allocation2 + $0x50] sm:$0xff]
    %v1599 = vld [vmem:[#allocation2 + $0x58] sm:$0xff]
    %v1600 = vld [vmem:[#allocation2 + $0x60] sm:$0xff]
    %v1601 = vld [vmem:[#allocation2 + $0x68] sm:$0xff]
    %v1602 = vadd.f32 %v1588, %v1589
    %1603 = vadd.xlane.f32.xlu0 %v1602
    %v1604 = vpop.xlane.xlu0 %1603
    %v1605 = vadd.f32 %v1590, %v1591
    %1606 = vadd.xlane.f32.xlu0 %v1605
    %v1607 = vpop.xlane.xlu0 %1606
    %v1608 = vadd.f32 %v1592, %v1593
    %1609 = vadd.xlane.f32.xlu0 %v1608
    %v1610 = vpop.xlane.xlu0 %1609
    %v1611 = vadd.f32 %v1594, %v1595
    %1612 = vadd.xlane.f32.xlu0 %v1611
    %v1613 = vpop.xlane.xlu0 %1612
    %v1614 = vadd.f32 %v1596, %v1597
    %1615 = vadd.xlane.f32.xlu0 %v1614
    %v1616 = vpop.xlane.xlu0 %1615
    %v1617 = vadd.f32 %v1598, %v1599
    %1618 = vadd.xlane.f32.xlu0 %v1617
    %v1619 = vpop.xlane.xlu0 %1618
    %v1620 = vadd.f32 %v1600, %v1601
    %1621 = vadd.xlane.f32.xlu0 %v1620
    %v1622 = vpop.xlane.xlu0 %1621
    %v1630 = vlaneseq
    %v1631 = vshrl.u32 %v1630, 7
    %v1632 = vsub.s32 %v454, %v1631
    %v1633 = vrot.slane %v1604, %v1632
    %v1634 = vlaneseq
    %v1635 = vshrl.u32 %v1634, 7
    %v1636 = vsub.s32 %v454, %v1635
    %v1637 = vrot.slane %v1607, %v1636
    %v1638 = vlaneseq
    %v1639 = vshrl.u32 %v1638, 7
    %v1640 = vsub.s32 %v454, %v1639
    %v1641 = vrot.slane %v1610, %v1640
    %v1642 = vlaneseq
    %v1643 = vshrl.u32 %v1642, 7
    %v1644 = vsub.s32 %v454, %v1643
    %v1645 = vrot.slane %v1613, %v1644
    %v1646 = vlaneseq
    %v1647 = vshrl.u32 %v1646, 7
    %v1648 = vsub.s32 %v454, %v1647
    %v1649 = vrot.slane %v1616, %v1648
    %v1650 = vlaneseq
    %v1651 = vshrl.u32 %v1650, 7
    %v1652 = vsub.s32 %v454, %v1651
    %v1653 = vrot.slane %v1619, %v1652
    %v1654 = vlaneseq
    %v1655 = vshrl.u32 %v1654, 7
    %v1656 = vsub.s32 %v454, %v1655
    %v1657 = vrot.slane %v1622, %v1656
    %v1658 = vsel %vm710, %v1637, %v1633
    %v1659 = vsel %vm712, %v1641, %v1658
    %v1660 = vsel %vm714, %v1645, %v1659
    %v1661 = vsel %vm716, %v1649, %v1660
    %v1662 = vsel %vm718, %v1653, %v1661
    %v1663 = vsel %vm720, %v1657, %v1662
    %vm1665 = vcmask 63488
    %1666 = vst.msk [vmem:[%s1] sm:$0x7f] %vm1665, %v1663
  $region13: #{nt_xent_loss.1} parent=0 // pred_fallthru
    _
  // Predicated region
  $region14: #{nt_xent_loss.1} parent=0 // pred_check
    _
  $region15: #{nt_xent_loss.1} parent=0 // pred_check_branch
    %1668 = sbr.rel (0) target = $region17
  $region16: #{nt_xent_loss.1} parent=0 // pred_region
    _
  $region17: #{nt_xent_loss.1} parent=0 // pred_fallthru
    _
  // Predicated region
  $region18: #{nt_xent_loss.1} parent=0 // pred_check
    _
  $region19: #{nt_xent_loss.1} parent=0 // pred_check_branch
    %1670 = sbr.rel (0) target = $region21
  $region20: #{nt_xent_loss.1} parent=0 // pred_region
    _
  $region21: #{nt_xent_loss.1} parent=0 // pred_fallthru
    _

</llo_original>
